<compile_context>
chip_gen: v6e
topology: v6e:2x2x1
jax: 0.10.0
libtpu: 0.0.40
codegen_flags: <defaults>
</compile_context>

<pallas_src>
import jax
import jax.numpy as jnp
from jax.experimental import pallas as pl
from jax.experimental.pallas import tpu as pltpu

N_HIDDEN = 32
N_LATENT = 8


# --------------------------------------------------------------------------- #
# Kernel
# --------------------------------------------------------------------------- #
def omni_kernel(xe_ref, alpha_ref, bias_ref, wih0_ref, w32_ref, wd1_ref, out_ref):
    NH, NL = N_HIDDEN, N_LATENT
    F = wih0_ref.shape[0]

    xe = xe_ref[...]                               # (TB, F + NL)
    x = xe[:, 0:F]
    eps = xe[:, F:F + NL]

    def gru_cell_zero_h(inp, w, bc, bhn):
        # PyTorch GRU cell with h_prev == 0 (hidden=None path).  bc already
        # contains b_ih + b_hh for the r/z columns and b_ih for the n column;
        # bhn is b_hh of the n gate (multiplied by r inside tanh).
        gi = jnp.dot(inp, w, preferred_element_type=jnp.float32) + bc
        r = jax.nn.sigmoid(gi[:, 0:NH])
        z = jax.nn.sigmoid(gi[:, NH:2 * NH])
        n = jnp.tanh(gi[:, 2 * NH:3 * NH] + r * bhn)
        return (1.0 - z) * n

    # GRU layer 0 (input F -> 32) and layer 1 (32 -> 32)
    h0 = gru_cell_zero_h(x, wih0_ref[...],
                         bias_ref[0:1, 0:3 * NH], bias_ref[0:1, 3 * NH:4 * NH])
    h1 = gru_cell_zero_h(h0, w32_ref[:, 0:3 * NH],
                         bias_ref[1:2, 0:3 * NH], bias_ref[1:2, 3 * NH:4 * NH])

    def prelu(v, idx):
        a = alpha_ref[idx]                         # SMEM scalar -> broadcast
        return jnp.where(v >= 0.0, v, a * v)

    def linear(v, w, b):
        return jnp.dot(v, w, preferred_element_type=jnp.float32) + b

    # ---- encoder ----
    e = prelu(linear(h1, w32_ref[:, 96:128], bias_ref[2:3, 0:32]), 0)
    e = prelu(linear(e, w32_ref[:, 128:160], bias_ref[2:3, 32:64]), 1)
    stats = linear(e, w32_ref[:, 160:176], bias_ref[2:3, 64:80])    # (TB, 16)
    mu = stats[:, 0:NL]
    logvar = stats[:, NL:2 * NL]

    # ---- reparameterization ----
    # TODO(synk): torch.randn_like(std) is sampled in-module; here eps is an
    # input (could use pltpu.prng_seed/stateful_normal for in-kernel RNG).
    zlat = mu + eps * jnp.exp(0.5 * logvar)

    # ---- decoder ----
    d = prelu(linear(zlat, wd1_ref[...], bias_ref[3:4, 0:32]), 2)
    d = prelu(linear(d, w32_ref[:, 176:208], bias_ref[3:4, 32:64]), 3)
    xrec = jax.nn.sigmoid(linear(d, w32_ref[:, 208:208 + F], bias_ref[4:5, 0:F]))

    # Single lane-dense packed store: [xrec | mu | logvar | h0 | h1 | zeros]
    used = F + 2 * NL + 2 * NH
    pieces = [xrec, mu, logvar, h0, h1]
    pad = out_ref.shape[1] - used
    if pad > 0:
        pieces.append(jnp.zeros((xrec.shape[0], pad), jnp.float32))
    out_ref[...] = jnp.concatenate(pieces, axis=-1)


# --------------------------------------------------------------------------- #
# Param packing (host side, done once)
# --------------------------------------------------------------------------- #
def pack_params(params, feats):
    NH, NL = N_HIDDEN, N_LATENT
    assert feats <= 128, "bias-slab packing assumes n_feats <= 128"
    g0, g1 = params['gru']

    def gru_bias_row(g):
        bih = g['b_ih'][0]                                   # (96,)
        bhh = g['b_hh'][0]                                   # (96,)
        bc = jnp.concatenate([bih[:2 * NH] + bhh[:2 * NH],   # fold r,z biases
                              bih[2 * NH:]])                 # n gate: b_ih only
        return jnp.concatenate([bc, bhh[2 * NH:]])           # (128,)

    (we1, be1), (we2, be2), (we3, be3) = params['enc']
    (wd1, bd1), (wd2, bd2), (wd3, bd3) = params['dec']

    def pad_row(vecs, width=128):
        v = jnp.concatenate(vecs)
        return jnp.pad(v, (0, width - v.shape[0]))

    zero = jnp.zeros((128,), jnp.float32)
    bias_slab = jnp.stack([
        gru_bias_row(g0),                      # row 0: GRU layer 0 biases
        gru_bias_row(g1),                      # row 1: GRU layer 1 biases
        pad_row([be1[0], be2[0], be3[0]]),     # row 2: encoder biases
        pad_row([bd1[0], bd2[0]]),             # row 3: decoder biases 1,2
        pad_row([bd3[0]]),                     # row 4: decoder bias 3
        zero, zero, zero,                      # rows 5-7: pad to (8, 128)
    ])

    # All weight matrices with 32 input rows, concatenated along lanes:
    # [wih1 (96) | we1 (32) | we2 (32) | we3 (16) | wd2 (32) | wd3 (F)]
    w32 = jnp.concatenate([g1['w_ih'], we1, we2, we3, wd2, wd3], axis=1)
    wih0 = g0['w_ih']                          # (F, 96)
    alphas = params['alphas']                  # (4,) PReLU slopes -> SMEM
    return wih0, w32, wd1, bias_slab, alphas


def _num_tensorcores():
    """Best-effort TensorCore count per device (v7x/megacore => 2)."""
    try:
        kind = getattr(jax.devices()[0], "device_kind", "").lower()
    except Exception:
        return 1
    return 2 if any(t in kind for t in ("v7", "v4", "v5p")) else 1


# --------------------------------------------------------------------------- #
# Wrapper
# --------------------------------------------------------------------------- #
def omni_anomaly_forward(x, eps, params, *, max_tile_b=8192):
    """Batched OmniAnomaly forward. Row b == one call of the PyTorch forward
    with input x[b] and hidden=None. Returns (xrec, mu, logvar, hidden) with
    shapes (B, F), (B, 8), (B, 8), (2, B, 32)."""
    B, F = x.shape
    NH, NL = N_HIDDEN, N_LATENT
    assert eps.shape == (B, NL)

    wih0, w32, wd1, bias_slab, alphas = pack_params(params, F)

    # Grid policy (overhead-bound kernel): as few / as large steps as possible.
    # 1 step on 1-TC chips, >=2 steps on 2-TC chips so both cores get work.
    # max_tile_b keeps the double-buffered per-step footprint well under the
    # default scoped VMEM limit (~1.2 KB/row => ~10 MB at 8192 rows).
    steps = max(_num_tensorcores(), pl.cdiv(B, max_tile_b))
    tile_b = ((pl.cdiv(B, steps) + 7) // 8) * 8            # sublane multiple
    B_pad = steps * tile_b

    xe = jnp.concatenate([x, eps], axis=1)                  # (B, F + NL)
    if B_pad != B:
        xe = jnp.pad(xe, ((0, B_pad - B), (0, 0)))

    OUT_W = ((F + 2 * NL + 2 * NH + 127) // 128) * 128      # lane-dense slab

    def full_spec(a):
        return pl.BlockSpec(a.shape, lambda i: (0, 0))      # weights stay resident

    packed = pl.pallas_call(
        omni_kernel,
        out_shape=jax.ShapeDtypeStruct((B_pad, OUT_W), jnp.float32),
        grid=(steps,),
        in_specs=[
            pl.BlockSpec((tile_b, F + NL), lambda i: (i, 0)),          # x|eps rows
            pl.BlockSpec(memory_space=pltpu.MemorySpace.SMEM),         # PReLU slopes
            full_spec(bias_slab),
            full_spec(wih0),
            full_spec(w32),
            full_spec(wd1),
        ],
        out_specs=pl.BlockSpec((tile_b, OUT_W), lambda i: (i, 0)),
        compiler_params=pltpu.CompilerParams(
            dimension_semantics=("parallel",)),              # megacore sharding
    )(xe, alphas, bias_slab, wih0, w32, wd1)

    packed = packed[:B]
    xrec = packed[:, 0:F]
    mu = packed[:, F:F + NL]
    logvar = packed[:, F + NL:F + 2 * NL]
    h0 = packed[:, F + 2 * NL:F + 2 * NL + NH]
    h1 = packed[:, F + 2 * NL + NH:F + 2 * NL + 2 * NH]
    hidden = jnp.stack([h0, h1], axis=0)                    # (num_layers=2, B, NH)
    return xrec, mu, logvar, hidden


# --------------------------------------------------------------------------- #
# Params (PyTorch-like init) and pure-JAX reference
# --------------------------------------------------------------------------- #
def init_params(key, feats, nh=N_HIDDEN, nl=N_LATENT):
    def uni(k, shape, fan_in):
        b = 1.0 / float(fan_in) ** 0.5
        return jax.random.uniform(k, shape, jnp.float32, -b, b)

    keys = iter(jax.random.split(key, 32))
    gru = []
    for in_dim in (feats, nh):
        gru.append(dict(
            w_ih=uni(next(keys), (in_dim, 3 * nh), nh),      # pre-transposed (in, 3*NH)
            w_hh=uni(next(keys), (nh, 3 * nh), nh),          # reference-only (h0 == 0)
            b_ih=uni(next(keys), (1, 3 * nh), nh),
            b_hh=uni(next(keys), (1, 3 * nh), nh),
        ))

    def lin(in_d, out_d):
        return (uni(next(keys), (in_d, out_d), in_d),
                uni(next(keys), (1, out_d), in_d))

    enc = [lin(nh, nh), lin(nh, nh), lin(nh, 2 * nl)]
    dec = [lin(nl, nh), lin(nh, nh), lin(nh, feats)]
    # PReLU slopes (PyTorch default 0.25); distinct values to catch index bugs.
    alphas = jnp.array([0.25, 0.2, 0.15, 0.1], jnp.float32)
    return dict(gru=gru, enc=enc, dec=dec, alphas=alphas)


def reference_forward(x, eps, params):
    """Pure-JAX reference mirroring the PyTorch forward (hidden=None path)."""
    NH, NL = N_HIDDEN, N_LATENT

    def gru_layer(inp, layer):
        h_prev = jnp.zeros((inp.shape[0], NH), jnp.float32)  # hidden=None -> zeros
        gi = inp @ layer['w_ih'] + layer['b_ih']
        gh = h_prev @ layer['w_hh'] + layer['b_hh']
        r = jax.nn.sigmoid(gi[:, :NH] + gh[:, :NH])
        z = jax.nn.sigmoid(gi[:, NH:2 * NH] + gh[:, NH:2 * NH])
        n = jnp.tanh(gi[:, 2 * NH:] + r * gh[:, 2 * NH:])
        return (1.0 - z) * n + z * h_prev

    h0 = gru_layer(x, params['gru'][0])
    h1 = gru_layer(h0, params['gru'][1])

    a = params['alphas']

    def prelu(v, alpha):
        return jnp.where(v >= 0.0, v, alpha * v)

    (we1, be1), (we2, be2), (we3, be3) = params['enc']
    e = prelu(h1 @ we1 + be1, a[0])
    e = prelu(e @ we2 + be2, a[1])
    stats = e @ we3 + be3
    mu, logvar = stats[:, :NL], stats[:, NL:]
    zlat = mu + eps * jnp.exp(0.5 * logvar)

    (wd1, bd1), (wd2, bd2), (wd3, bd3) = params['dec']
    d = prelu(zlat @ wd1 + bd1, a[2])
    d = prelu(d @ wd2 + bd2, a[3])
    xrec = jax.nn.sigmoid(d @ wd3 + bd3)
    return xrec, mu, logvar, jnp.stack([h0, h1], axis=0)


# --------------------------------------------------------------------------- #
if __name__ == "__main__":
    FEATS = 16                    # n_feats
    B = 32                        # independent windows batched per call

    key = jax.random.PRNGKey(0)
    k_x, k_eps, k_par = jax.random.split(key, 3)
    x = jax.random.normal(k_x, (B, FEATS), dtype=jnp.float32)
    eps = jax.random.normal(k_eps, (B, N_LATENT), dtype=jnp.float32)
    params = init_params(k_par, FEATS)

    outs = omni_anomaly_forward(x, eps, params)
    outs = jax.block_until_ready(outs)
    xrec, mu, logvar, hidden = outs

    rxrec, rmu, rlogvar, rhidden = reference_forward(x, eps, params)
    assert xrec.shape == (B, FEATS) and mu.shape == (B, N_LATENT)
    assert logvar.shape == (B, N_LATENT) and hidden.shape == (2, B, N_HIDDEN)
    for got, ref, name in [(xrec, rxrec, "x"), (mu, rmu, "mu"),
                           (logvar, rlogvar, "logvar"), (hidden, rhidden, "hidden")]:
        err = float(jnp.max(jnp.abs(got - ref)))
        assert bool(jnp.allclose(got, ref, atol=1e-3, rtol=1e-3)), \
            f"{name} mismatch: max abs err {err}"

    print("KERNEL_OK")
</pallas_src>

<mosaic_0001>
module attributes {stable_mosaic.version = 11 : i64} {
  func.func @omni_kernel(%arg0: i32, %arg1: memref<32x24xf32, #tpu.memory_space<vmem>>, %arg2: memref<4xf32, #tpu.memory_space<smem>>, %arg3: memref<8x128xf32, #tpu.memory_space<vmem>>, %arg4: memref<16x96xf32, #tpu.memory_space<vmem>>, %arg5: memref<32x224xf32, #tpu.memory_space<vmem>>, %arg6: memref<8x32xf32, #tpu.memory_space<vmem>>, %arg7: memref<32x128xf32, #tpu.memory_space<vmem>>) attributes {dimension_semantics = [#tpu.dimension_semantics<parallel>], iteration_bounds = array<i64: 1>, scalar_prefetch = 0 : i64, scratch_operands = 0 : i64, tpu.core_type = #tpu.core_type<tc>, window_params = [{transform_indices = @transform_0, window_bounds = array<i64: 32, 24>}, {transform_indices = @transform_1, window_bounds = array<i64: 4>}, {pipeline_mode = #tpu.pipeline_mode<synchronous>, transform_indices = @transform_2, window_bounds = array<i64: 8, 128>}, {pipeline_mode = #tpu.pipeline_mode<synchronous>, transform_indices = @transform_3, window_bounds = array<i64: 16, 96>}, {pipeline_mode = #tpu.pipeline_mode<synchronous>, transform_indices = @transform_4, window_bounds = array<i64: 32, 224>}, {pipeline_mode = #tpu.pipeline_mode<synchronous>, transform_indices = @transform_5, window_bounds = array<i64: 8, 32>}, {transform_indices = @transform_6, window_bounds = array<i64: 32, 128>}]} {
    %c0 = arith.constant 0 : index
    %c0_0 = arith.constant 0 : index
    %0 = vector.load %arg1[%c0, %c0_0] : memref<32x24xf32, #tpu.memory_space<vmem>>, vector<32x24xf32>
    %1 = vector.extract_strided_slice %0 {offsets = [0, 0], sizes = [32, 16], strides = [1, 1]} : vector<32x24xf32> to vector<32x16xf32>
    %2 = vector.extract_strided_slice %0 {offsets = [0, 16], sizes = [32, 8], strides = [1, 1]} : vector<32x24xf32> to vector<32x8xf32>
    %c0_1 = arith.constant 0 : index
    %c0_2 = arith.constant 0 : index
    %3 = vector.load %arg4[%c0_1, %c0_2] : memref<16x96xf32, #tpu.memory_space<vmem>>, vector<16x96xf32>
    %c0_3 = arith.constant 0 : index
    %c0_4 = arith.constant 0 : index
    %4 = vector.load %arg3[%c0_3, %c0_4] : memref<8x128xf32, #tpu.memory_space<vmem>>, vector<1x96xf32>
    %c0_5 = arith.constant 0 : index
    %c96 = arith.constant 96 : index
    %5 = vector.load %arg3[%c0_5, %c96] : memref<8x128xf32, #tpu.memory_space<vmem>>, vector<1x32xf32>
    %cst = arith.constant dense<0.000000e+00> : vector<32x96xf32>
    %6 = tpu.matmul %1, %3, %cst {dimension_numbers = #tpu.dot_dimension_numbers<[1], [0], [0], [1], [0, 0, 1, 1], [], []>} : vector<32x16xf32>, vector<16x96xf32>, vector<32x96xf32> -> vector<32x96xf32>
    %7 = vector.broadcast %4 : vector<1x96xf32> to vector<32x96xf32>
    %8 = arith.addf %6, %7 : vector<32x96xf32>
    %9 = vector.extract_strided_slice %8 {offsets = [0, 0], sizes = [32, 32], strides = [1, 1]} : vector<32x96xf32> to vector<32x32xf32>
    %10 = arith.negf %9 : vector<32x32xf32>
    %11 = math.exp %10 : vector<32x32xf32>
    %cst_6 = arith.constant 1.000000e+00 : f32
    %12 = vector.broadcast %cst_6 : f32 to vector<32x32xf32>
    %13 = arith.addf %12, %11 : vector<32x32xf32>
    %14 = arith.divf %12, %13 : vector<32x32xf32>
    %15 = vector.extract_strided_slice %8 {offsets = [0, 32], sizes = [32, 32], strides = [1, 1]} : vector<32x96xf32> to vector<32x32xf32>
    %16 = arith.negf %15 : vector<32x32xf32>
    %17 = math.exp %16 : vector<32x32xf32>
    %cst_7 = arith.constant 1.000000e+00 : f32
    %18 = vector.broadcast %cst_7 : f32 to vector<32x32xf32>
    %19 = arith.addf %18, %17 : vector<32x32xf32>
    %20 = arith.divf %18, %19 : vector<32x32xf32>
    %21 = vector.extract_strided_slice %8 {offsets = [0, 64], sizes = [32, 32], strides = [1, 1]} : vector<32x96xf32> to vector<32x32xf32>
    %22 = vector.broadcast %5 : vector<1x32xf32> to vector<32x32xf32>
    %23 = arith.mulf %14, %22 : vector<32x32xf32>
    %24 = arith.addf %21, %23 : vector<32x32xf32>
    %25 = math.tanh %24 : vector<32x32xf32>
    %cst_8 = arith.constant 1.000000e+00 : f32
    %26 = vector.broadcast %cst_8 : f32 to vector<32x32xf32>
    %27 = arith.subf %26, %20 : vector<32x32xf32>
    %28 = arith.mulf %27, %25 : vector<32x32xf32>
    %c0_9 = arith.constant 0 : index
    %c0_10 = arith.constant 0 : index
    %29 = vector.load %arg5[%c0_9, %c0_10] : memref<32x224xf32, #tpu.memory_space<vmem>>, vector<32x96xf32>
    %c1 = arith.constant 1 : index
    %c0_11 = arith.constant 0 : index
    %30 = vector.load %arg3[%c1, %c0_11] : memref<8x128xf32, #tpu.memory_space<vmem>>, vector<1x96xf32>
    %c1_12 = arith.constant 1 : index
    %c96_13 = arith.constant 96 : index
    %31 = vector.load %arg3[%c1_12, %c96_13] : memref<8x128xf32, #tpu.memory_space<vmem>>, vector<1x32xf32>
    %cst_14 = arith.constant dense<0.000000e+00> : vector<32x96xf32>
    %32 = tpu.matmul %28, %29, %cst_14 {dimension_numbers = #tpu.dot_dimension_numbers<[1], [0], [0], [1], [0, 0, 1, 1], [], []>} : vector<32x32xf32>, vector<32x96xf32>, vector<32x96xf32> -> vector<32x96xf32>
    %33 = vector.broadcast %30 : vector<1x96xf32> to vector<32x96xf32>
    %34 = arith.addf %32, %33 : vector<32x96xf32>
    %35 = vector.extract_strided_slice %34 {offsets = [0, 0], sizes = [32, 32], strides = [1, 1]} : vector<32x96xf32> to vector<32x32xf32>
    %36 = arith.negf %35 : vector<32x32xf32>
    %37 = math.exp %36 : vector<32x32xf32>
    %cst_15 = arith.constant 1.000000e+00 : f32
    %38 = vector.broadcast %cst_15 : f32 to vector<32x32xf32>
    %39 = arith.addf %38, %37 : vector<32x32xf32>
    %40 = arith.divf %38, %39 : vector<32x32xf32>
    %41 = vector.extract_strided_slice %34 {offsets = [0, 32], sizes = [32, 32], strides = [1, 1]} : vector<32x96xf32> to vector<32x32xf32>
    %42 = arith.negf %41 : vector<32x32xf32>
    %43 = math.exp %42 : vector<32x32xf32>
    %cst_16 = arith.constant 1.000000e+00 : f32
    %44 = vector.broadcast %cst_16 : f32 to vector<32x32xf32>
    %45 = arith.addf %44, %43 : vector<32x32xf32>
    %46 = arith.divf %44, %45 : vector<32x32xf32>
    %47 = vector.extract_strided_slice %34 {offsets = [0, 64], sizes = [32, 32], strides = [1, 1]} : vector<32x96xf32> to vector<32x32xf32>
    %48 = vector.broadcast %31 : vector<1x32xf32> to vector<32x32xf32>
    %49 = arith.mulf %40, %48 : vector<32x32xf32>
    %50 = arith.addf %47, %49 : vector<32x32xf32>
    %51 = math.tanh %50 : vector<32x32xf32>
    %cst_17 = arith.constant 1.000000e+00 : f32
    %52 = vector.broadcast %cst_17 : f32 to vector<32x32xf32>
    %53 = arith.subf %52, %46 : vector<32x32xf32>
    %54 = arith.mulf %53, %51 : vector<32x32xf32>
    %c0_18 = arith.constant 0 : index
    %c96_19 = arith.constant 96 : index
    %55 = vector.load %arg5[%c0_18, %c96_19] : memref<32x224xf32, #tpu.memory_space<vmem>>, vector<32x32xf32>
    %c2 = arith.constant 2 : index
    %c0_20 = arith.constant 0 : index
    %56 = vector.load %arg3[%c2, %c0_20] : memref<8x128xf32, #tpu.memory_space<vmem>>, vector<1x32xf32>
    %cst_21 = arith.constant dense<0.000000e+00> : vector<32x32xf32>
    %57 = tpu.matmul %54, %55, %cst_21 {dimension_numbers = #tpu.dot_dimension_numbers<[1], [0], [0], [1], [0, 0, 1, 1], [], []>} : vector<32x32xf32>, vector<32x32xf32>, vector<32x32xf32> -> vector<32x32xf32>
    %58 = vector.broadcast %56 : vector<1x32xf32> to vector<32x32xf32>
    %59 = arith.addf %57, %58 : vector<32x32xf32>
    %c0_22 = arith.constant 0 : index
    %60 = memref.load %arg2[%c0_22] : memref<4xf32, #tpu.memory_space<smem>>
    %cst_23 = arith.constant 0.000000e+00 : f32
    %61 = vector.broadcast %cst_23 : f32 to vector<32x32xf32>
    %62 = arith.cmpf oge, %59, %61 : vector<32x32xf32>
    %63 = vector.broadcast %60 : f32 to vector<32x32xf32>
    %64 = arith.mulf %63, %59 : vector<32x32xf32>
    %65 = arith.select %62, %59, %64 : vector<32x32xi1>, vector<32x32xf32>
    %c0_24 = arith.constant 0 : index
    %c128 = arith.constant 128 : index
    %66 = vector.load %arg5[%c0_24, %c128] : memref<32x224xf32, #tpu.memory_space<vmem>>, vector<32x32xf32>
    %c2_25 = arith.constant 2 : index
    %c32 = arith.constant 32 : index
    %67 = vector.load %arg3[%c2_25, %c32] : memref<8x128xf32, #tpu.memory_space<vmem>>, vector<1x32xf32>
    %cst_26 = arith.constant dense<0.000000e+00> : vector<32x32xf32>
    %68 = tpu.matmul %65, %66, %cst_26 {dimension_numbers = #tpu.dot_dimension_numbers<[1], [0], [0], [1], [0, 0, 1, 1], [], []>} : vector<32x32xf32>, vector<32x32xf32>, vector<32x32xf32> -> vector<32x32xf32>
    %69 = vector.broadcast %67 : vector<1x32xf32> to vector<32x32xf32>
    %70 = arith.addf %68, %69 : vector<32x32xf32>
    %c1_27 = arith.constant 1 : index
    %71 = memref.load %arg2[%c1_27] : memref<4xf32, #tpu.memory_space<smem>>
    %cst_28 = arith.constant 0.000000e+00 : f32
    %72 = vector.broadcast %cst_28 : f32 to vector<32x32xf32>
    %73 = arith.cmpf oge, %70, %72 : vector<32x32xf32>
    %74 = vector.broadcast %71 : f32 to vector<32x32xf32>
    %75 = arith.mulf %74, %70 : vector<32x32xf32>
    %76 = arith.select %73, %70, %75 : vector<32x32xi1>, vector<32x32xf32>
    %c0_29 = arith.constant 0 : index
    %c160 = arith.constant 160 : index
    %77 = vector.load %arg5[%c0_29, %c160] : memref<32x224xf32, #tpu.memory_space<vmem>>, vector<32x16xf32>
    %c2_30 = arith.constant 2 : index
    %c64 = arith.constant 64 : index
    %78 = vector.load %arg3[%c2_30, %c64] : memref<8x128xf32, #tpu.memory_space<vmem>>, vector<1x16xf32>
    %cst_31 = arith.constant dense<0.000000e+00> : vector<32x16xf32>
    %79 = tpu.matmul %76, %77, %cst_31 {dimension_numbers = #tpu.dot_dimension_numbers<[1], [0], [0], [1], [0, 0, 1, 1], [], []>} : vector<32x32xf32>, vector<32x16xf32>, vector<32x16xf32> -> vector<32x16xf32>
    %80 = vector.broadcast %78 : vector<1x16xf32> to vector<32x16xf32>
    %81 = arith.addf %79, %80 : vector<32x16xf32>
    %82 = vector.extract_strided_slice %81 {offsets = [0, 0], sizes = [32, 8], strides = [1, 1]} : vector<32x16xf32> to vector<32x8xf32>
    %83 = vector.extract_strided_slice %81 {offsets = [0, 8], sizes = [32, 8], strides = [1, 1]} : vector<32x16xf32> to vector<32x8xf32>
    %cst_32 = arith.constant 5.000000e-01 : f32
    %84 = vector.broadcast %cst_32 : f32 to vector<32x8xf32>
    %85 = arith.mulf %84, %83 : vector<32x8xf32>
    %86 = math.exp %85 : vector<32x8xf32>
    %87 = arith.mulf %2, %86 : vector<32x8xf32>
    %88 = arith.addf %82, %87 : vector<32x8xf32>
    %c0_33 = arith.constant 0 : index
    %c0_34 = arith.constant 0 : index
    %89 = vector.load %arg6[%c0_33, %c0_34] : memref<8x32xf32, #tpu.memory_space<vmem>>, vector<8x32xf32>
    %c3 = arith.constant 3 : index
    %c0_35 = arith.constant 0 : index
    %90 = vector.load %arg3[%c3, %c0_35] : memref<8x128xf32, #tpu.memory_space<vmem>>, vector<1x32xf32>
    %cst_36 = arith.constant dense<0.000000e+00> : vector<32x32xf32>
    %91 = tpu.matmul %88, %89, %cst_36 {dimension_numbers = #tpu.dot_dimension_numbers<[1], [0], [0], [1], [0, 0, 1, 1], [], []>} : vector<32x8xf32>, vector<8x32xf32>, vector<32x32xf32> -> vector<32x32xf32>
    %92 = vector.broadcast %90 : vector<1x32xf32> to vector<32x32xf32>
    %93 = arith.addf %91, %92 : vector<32x32xf32>
    %c2_37 = arith.constant 2 : index
    %94 = memref.load %arg2[%c2_37] : memref<4xf32, #tpu.memory_space<smem>>
    %cst_38 = arith.constant 0.000000e+00 : f32
    %95 = vector.broadcast %cst_38 : f32 to vector<32x32xf32>
    %96 = arith.cmpf oge, %93, %95 : vector<32x32xf32>
    %97 = vector.broadcast %94 : f32 to vector<32x32xf32>
    %98 = arith.mulf %97, %93 : vector<32x32xf32>
    %99 = arith.select %96, %93, %98 : vector<32x32xi1>, vector<32x32xf32>
    %c0_39 = arith.constant 0 : index
    %c176 = arith.constant 176 : index
    %100 = vector.load %arg5[%c0_39, %c176] : memref<32x224xf32, #tpu.memory_space<vmem>>, vector<32x32xf32>
    %c3_40 = arith.constant 3 : index
    %c32_41 = arith.constant 32 : index
    %101 = vector.load %arg3[%c3_40, %c32_41] : memref<8x128xf32, #tpu.memory_space<vmem>>, vector<1x32xf32>
    %cst_42 = arith.constant dense<0.000000e+00> : vector<32x32xf32>
    %102 = tpu.matmul %99, %100, %cst_42 {dimension_numbers = #tpu.dot_dimension_numbers<[1], [0], [0], [1], [0, 0, 1, 1], [], []>} : vector<32x32xf32>, vector<32x32xf32>, vector<32x32xf32> -> vector<32x32xf32>
    %103 = vector.broadcast %101 : vector<1x32xf32> to vector<32x32xf32>
    %104 = arith.addf %102, %103 : vector<32x32xf32>
    %c3_43 = arith.constant 3 : index
    %105 = memref.load %arg2[%c3_43] : memref<4xf32, #tpu.memory_space<smem>>
    %cst_44 = arith.constant 0.000000e+00 : f32
    %106 = vector.broadcast %cst_44 : f32 to vector<32x32xf32>
    %107 = arith.cmpf oge, %104, %106 : vector<32x32xf32>
    %108 = vector.broadcast %105 : f32 to vector<32x32xf32>
    %109 = arith.mulf %108, %104 : vector<32x32xf32>
    %110 = arith.select %107, %104, %109 : vector<32x32xi1>, vector<32x32xf32>
    %c0_45 = arith.constant 0 : index
    %c208 = arith.constant 208 : index
    %111 = vector.load %arg5[%c0_45, %c208] : memref<32x224xf32, #tpu.memory_space<vmem>>, vector<32x16xf32>
    %c4 = arith.constant 4 : index
    %c0_46 = arith.constant 0 : index
    %112 = vector.load %arg3[%c4, %c0_46] : memref<8x128xf32, #tpu.memory_space<vmem>>, vector<1x16xf32>
    %cst_47 = arith.constant dense<0.000000e+00> : vector<32x16xf32>
    %113 = tpu.matmul %110, %111, %cst_47 {dimension_numbers = #tpu.dot_dimension_numbers<[1], [0], [0], [1], [0, 0, 1, 1], [], []>} : vector<32x32xf32>, vector<32x16xf32>, vector<32x16xf32> -> vector<32x16xf32>
    %114 = vector.broadcast %112 : vector<1x16xf32> to vector<32x16xf32>
    %115 = arith.addf %113, %114 : vector<32x16xf32>
    %116 = arith.negf %115 : vector<32x16xf32>
    %117 = math.exp %116 : vector<32x16xf32>
    %cst_48 = arith.constant 1.000000e+00 : f32
    %118 = vector.broadcast %cst_48 : f32 to vector<32x16xf32>
    %119 = arith.addf %118, %117 : vector<32x16xf32>
    %120 = arith.divf %118, %119 : vector<32x16xf32>
    %cst_49 = arith.constant 0.000000e+00 : f32
    %121 = vector.broadcast %cst_49 : f32 to vector<32x32xf32>
    %122 = tpu.concatenate %120, %82, %83, %28, %54, %121 in 1 : vector<32x16xf32>, vector<32x8xf32>, vector<32x8xf32>, vector<32x32xf32>, vector<32x32xf32>, vector<32x32xf32> -> vector<32x128xf32>
    %c0_50 = arith.constant 0 : index
    %c0_51 = arith.constant 0 : index
    %123 = vector.load %arg7[%c0_50, %c0_51] : memref<32x128xf32, #tpu.memory_space<vmem>>, vector<32x128xf32>
    tpu.vector_store %arg7[%c0_50, %c0_51], %122 {strides = array<i32>} : memref<32x128xf32, #tpu.memory_space<vmem>>, vector<32x128xf32>,
    return
  }
  func.func @transform_0(%arg0: i32) -> (i32, i32) {
    %c0_i32 = arith.constant 0 : i32
    %c0_i32_0 = arith.constant 0 : i32
    return %arg0, %c0_i32 : i32, i32
  }
  func.func @transform_1(%arg0: i32) -> i32 {
    %c0_i32 = arith.constant 0 : i32
    %c0_i32_0 = arith.constant 0 : i32
    return %c0_i32 : i32
  }
  func.func @transform_2(%arg0: i32) -> (i32, i32) {
    %c0_i32 = arith.constant 0 : i32
    %c0_i32_0 = arith.constant 0 : i32
    %c0_i32_1 = arith.constant 0 : i32
    return %c0_i32, %c0_i32_0 : i32, i32
  }
  func.func @transform_3(%arg0: i32) -> (i32, i32) {
    %c0_i32 = arith.constant 0 : i32
    %c0_i32_0 = arith.constant 0 : i32
    %c0_i32_1 = arith.constant 0 : i32
    return %c0_i32, %c0_i32_0 : i32, i32
  }
  func.func @transform_4(%arg0: i32) -> (i32, i32) {
    %c0_i32 = arith.constant 0 : i32
    %c0_i32_0 = arith.constant 0 : i32
    %c0_i32_1 = arith.constant 0 : i32
    return %c0_i32, %c0_i32_0 : i32, i32
  }
  func.func @transform_5(%arg0: i32) -> (i32, i32) {
    %c0_i32 = arith.constant 0 : i32
    %c0_i32_0 = arith.constant 0 : i32
    %c0_i32_1 = arith.constant 0 : i32
    return %c0_i32, %c0_i32_0 : i32, i32
  }
  func.func @transform_6(%arg0: i32) -> (i32, i32) {
    %c0_i32 = arith.constant 0 : i32
    %c0_i32_0 = arith.constant 0 : i32
    return %arg0, %c0_i32 : i32, i32
  }
}

</mosaic_0001>

<llo_original>
// kernel: tpu_custom_call.1
$region0: #{tpu_custom_call.1}
  #allocation0 [shape = 'u32[]', space=smem, size = 0x4, offset = 0x4, fixed_abs, tag = 'smem constant byte address 0x4 - core index']
  #allocation1 [shape = 'u32[144,128]{1,0:T(1,128)}', space=vmem, size = 0x12000, scoped, tag = 'internal scratch']
  %s0 = inlined_call_operand.vmem [shape: f32[32,24], index: 0, kind: input, shape index: {}]
  %s1 = inlined_call_operand.vmem [shape: f32[4], index: 1, kind: input, shape index: {}]
  %s2 = inlined_call_operand.vmem [shape: f32[8,128], index: 2, kind: input, shape index: {}]
  %s3 = inlined_call_operand.vmem [shape: f32[16,96], index: 3, kind: input, shape index: {}]
  %s4 = inlined_call_operand.hbm [shape: f32[32,224], index: 4, kind: input, shape index: {}]
  %s5 = inlined_call_operand.vmem [shape: f32[8,32], index: 5, kind: input, shape index: {}]
  %s6 = inlined_call_operand.hbm [shape: f32[32,128], index: 6, kind: output, shape index: {}]
  %s7 = sld [smem:[#allocation0]]
  $region42: #{tpu_custom_call.1} parent=0
    _
  %s9 = ssub.s32 1, %s7
  %s10 = scalar_select 0, %s9, %s7
  $region1: #{tpu_custom_call.1} parent=0
    #allocation2 [shape = 'u8[512]{0}', space=smem, size = 0x200, scoped, tag = 'input window, operand 1, single buffered']
    #allocation3 [shape = 's32[1]{0}', space=sflag, size = 0x4, scoped, tag = 'scoped memory for tpu_custom_call.1']
    #allocation4 [shape = 's32[1]{0}', space=sflag, size = 0x4, scoped, tag = 'scoped memory for tpu_custom_call.1']
    #allocation5 [shape = 's32[1]{0}', space=sflag, size = 0x4, scoped, tag = 'scoped memory for tpu_custom_call.1']
    #allocation6 [shape = 'u8[32768]{0}', space=vmem, size = 0x8000, scoped, tag = 'input window, operand 4, single buffered']
    #allocation7 [shape = 'u8[16384]{0}', space=vmem, size = 0x4000, scoped, tag = 'output window, operand 0, single buffered']
    %11 = vsyncpa [#allocation5], 0
    %12 = vsyncpa [#allocation3], 0
    %13 = vsyncpa [#allocation4], 0
    // Predicated region
    $region2: #{tpu_custom_call.1} parent=1 // pred_check
      _
    $region3: #{tpu_custom_call.1} parent=1 // pred_check_branch
      %15 = sbr.rel (0) target = $region5
    $region4: #{tpu_custom_call.1} parent=1 // pred_region
      _
    $region5: #{tpu_custom_call.1} parent=1 // pred_fallthru
      _
    // Predicated region
    $region6: #{tpu_custom_call.1} parent=1 // pred_check
      _
    $region7: #{tpu_custom_call.1} parent=1 // pred_check_branch
      %17 = sbr.rel (0) target = $region9
    $region8: #{tpu_custom_call.1} parent=1 // pred_region
      %s19 = ssub.s32 16, 16
      %20 = vsyncadd [#allocation5], %s19
      %s22 = sshll.u32 %s1, 4
      %s23 = int_to_ptr.vmem [resolvable:$true] %s22
      %25 = dma.vmem_to_smem %s23, 16, [#allocation2], [#allocation5]
    $region9: #{tpu_custom_call.1} parent=1 // pred_fallthru
      _
    // Predicated region
    $region10: #{tpu_custom_call.1} parent=1 // pred_check
      _
    $region11: #{tpu_custom_call.1} parent=1 // pred_check_branch
      %27 = sbr.rel (0) target = $region13
    $region12: #{tpu_custom_call.1} parent=1 // pred_region
      _
    $region13: #{tpu_custom_call.1} parent=1 // pred_fallthru
      _
    // Predicated region
    $region14: #{tpu_custom_call.1} parent=1 // pred_check
      _
    $region15: #{tpu_custom_call.1} parent=1 // pred_check_branch
      %29 = sbr.rel (0) target = $region17
    $region16: #{tpu_custom_call.1} parent=1 // pred_region
      _
    $region17: #{tpu_custom_call.1} parent=1 // pred_fallthru
      _
    // Predicated region
    $region18: #{tpu_custom_call.1} parent=1 // pred_check
      _
    $region19: #{tpu_custom_call.1} parent=1 // pred_check_branch
      %31 = sbr.rel (0) target = $region21
    $region20: #{tpu_custom_call.1} parent=1 // pred_region
      %s33 = ssub.s32 1024, 1024
      %34 = vsyncadd [#allocation3], %s33
      %s35 = sshll.u32 [#allocation6], 4
      %s36 = int_to_ptr.vmem [resolvable:$true] %s35
      %41 = dma.hbm_to_vmem [thread:$0]  %s4, 1024, %s36, [#allocation3], 256, 256, 16
    $region21: #{tpu_custom_call.1} parent=1 // pred_fallthru
      _
    // Predicated region
    $region22: #{tpu_custom_call.1} parent=1 // pred_check
      _
    $region23: #{tpu_custom_call.1} parent=1 // pred_check_branch
      %43 = sbr.rel (0) target = $region25
    $region24: #{tpu_custom_call.1} parent=1 // pred_region
      _
    $region25: #{tpu_custom_call.1} parent=1 // pred_fallthru
      _
    // Predicated region
    $region26: #{tpu_custom_call.1} parent=1 // pred_check
      _
    $region27: #{tpu_custom_call.1} parent=1 // pred_check_branch
      %45 = sbr.rel (0) target = $region29
    $region28: #{tpu_custom_call.1} parent=1 // pred_region
      %46 = dma.done [#allocation5], 16
    $region29: #{tpu_custom_call.1} parent=1 // pred_fallthru
      _
    // Predicated region
    $region30: #{tpu_custom_call.1} parent=1 // pred_check
      _
    $region31: #{tpu_custom_call.1} parent=1 // pred_check_branch
      %48 = sbr.rel (0) target = $region33
    $region32: #{tpu_custom_call.1} parent=1 // pred_region
      %49 = dma.done [#allocation3], 1024
    $region33: #{tpu_custom_call.1} parent=1 // pred_fallthru
      _
    %50 = sfence
    %v51 = vld [vmem:[%s0] sm:$0xff]
    %v52 = vld [vmem:[%s0 + $0x8] sm:$0xff]
    %v53 = vld [vmem:[%s0 + $0x10] sm:$0xff]
    %v54 = vld [vmem:[%s0 + $0x18] sm:$0xff]
    %v55 = vld [vmem:[%s3] sm:$0xff]
    %v56 = vld [vmem:[%s3 + $0x8] sm:$0xff]
    %v57 = vld [vmem:[%s2] sm:$0x1]
    %v58 = vlaneseq
    %v59 = vshrl.u32 %v58, 7
    %v60 = vsub.s32 0, %v59
    %v61 = vrot.slane %v57, %v60
    %vm62 = vcmask 130048
    %v64 = vsel %vm62, %v51, 0
    %v67 = vsel %vm62, %v52, 0
    %v70 = vsel %vm62, %v53, 0
    %v73 = vsel %vm62, %v54, 0
    %75 = vmatprep.subr.mxu0 0.0
    %76 = vmatpush1.msra.mxu0 0.0
    %77 = vmatprep.subr.mxu0 0.0
    %78 = vmatpush1.msra.mxu0 0.0
    %79 = vmatprep.subr.mxu0 0.0
    %80 = vmatpush1.msra.mxu0 0.0
    %81 = vmatprep.subr.mxu0 0.0
    %82 = vmatpush1.msra.mxu0 0.0
    %83 = vmatprep.subr.mxu0 0.0
    %84 = vmatpush1.msra.mxu0 0.0
    %85 = vmatprep.subr.mxu0 0.0
    %86 = vmatpush1.msra.mxu0 0.0
    %87 = vmatprep.subr.mxu0 0.0
    %88 = vmatpush1.msra.mxu0 0.0
    %89 = vmatprep.subr.mxu0 0.0
    %90 = vmatpush1.msra.mxu0 0.0
    %91 = vmatprep.subr.mxu0 0.0
    %92 = vmatpush1.msra.mxu0 0.0
    %93 = vmatprep.subr.mxu0 0.0
    %94 = vmatpush1.msra.mxu0 0.0
    %95 = vmatprep.subr.mxu0 0.0
    %96 = vmatpush1.msra.mxu0 0.0
    %97 = vmatprep.subr.mxu0 0.0
    %98 = vmatpush1.msra.mxu0 0.0
    %99 = vmatprep.subr.mxu0 0.0
    %100 = vmatpush1.msra.mxu0 0.0
    %101 = vmatprep.subr.mxu0 0.0
    %102 = vmatpush1.msra.mxu0 0.0
    %103 = vmatprep.subr.mxu0 0.0
    %104 = vmatpush1.msra.mxu0 %v56
    %105 = vmatprep.subr.mxu0 0.0
    %106 = vmatpush1.msra.mxu0 %v55
    %107 = vmatprep.subr.mxu0 0.0
    %108 = vmatpush2.msra.mxu0 0.0
    %109 = vmatprep.subr.mxu0 0.0
    %110 = vmatpush2.msra.mxu0 0.0
    %111 = vmatprep.subr.mxu0 0.0
    %112 = vmatpush2.msra.mxu0 0.0
    %113 = vmatprep.subr.mxu0 0.0
    %114 = vmatpush2.msra.mxu0 0.0
    %115 = vmatprep.subr.mxu0 0.0
    %116 = vmatpush2.msra.mxu0 0.0
    %117 = vmatprep.subr.mxu0 0.0
    %118 = vmatpush2.msra.mxu0 0.0
    %119 = vmatprep.subr.mxu0 0.0
    %120 = vmatpush2.msra.mxu0 0.0
    %121 = vmatprep.subr.mxu0 0.0
    %122 = vmatpush2.msra.mxu0 0.0
    %123 = vmatprep.subr.mxu0 0.0
    %124 = vmatpush2.msra.mxu0 0.0
    %125 = vmatprep.subr.mxu0 0.0
    %126 = vmatpush2.msra.mxu0 0.0
    %127 = vmatprep.subr.mxu0 0.0
    %128 = vmatpush2.msra.mxu0 0.0
    %129 = vmatprep.subr.mxu0 0.0
    %130 = vmatpush2.msra.mxu0 0.0
    %131 = vmatprep.subr.mxu0 0.0
    %132 = vmatpush2.msra.mxu0 0.0
    %133 = vmatprep.subr.mxu0 0.0
    %134 = vmatpush2.msra.mxu0 0.0
    %135 = vmatprep.subr.mxu0 0.0
    %136 = vmatpush2.msra.mxu0 0.0
    %137 = vmatprep.subr.mxu0 0.0
    %138 = vmatpush2.msra.mxu0 0.0
    %139 = vmatprep.mubr.f32.mxu0 0.0
    %140 = vmatmul.mubr.f32.gmra.mxu0 %v64
    %v141 = vpop.f32.mrf.mxu0
    %v142 = vadd.f32 %v61, %v141
    %v143 = vpop.f32.mrf.mxu0
    %144 = vmatprep.mubr.f32.mxu0 0.0
    %145 = vmatmul.mubr.f32.gmra.mxu0 %v67
    %v146 = vpop.f32.mrf.mxu0
    %v147 = vadd.f32 %v61, %v146
    %v148 = vpop.f32.mrf.mxu0
    %149 = vmatprep.mubr.f32.mxu0 0.0
    %150 = vmatmul.mubr.f32.gmra.mxu0 %v70
    %v151 = vpop.f32.mrf.mxu0
    %v152 = vadd.f32 %v61, %v151
    %v153 = vpop.f32.mrf.mxu0
    %154 = vmatprep.mubr.f32.mxu0 0.0
    %155 = vmatmul.mubr.f32.gmra.mxu0 %v73
    %v156 = vpop.f32.mrf.mxu0
    %v157 = vadd.f32 %v61, %v156
    %v158 = vpop.f32.mrf.mxu0
    %159 = vdwg.mxu0
    %v160 = vxor.u32 %v142, 2147483648
    %v161 = vxor.u32 %v147, 2147483648
    %v162 = vxor.u32 %v152, 2147483648
    %v163 = vxor.u32 %v157, 2147483648
    %v164 = vmul.f32 %v160, 1.442695
    %v165 = vpow.pop %v164
    %v166 = vmul.f32 %v161, 1.442695
    %v167 = vpow.pop %v166
    %v168 = vmul.f32 %v162, 1.442695
    %v169 = vpow.pop %v168
    %v170 = vmul.f32 %v163, 1.442695
    %v171 = vpow.pop %v170
    %v172 = vadd.f32 %v165, 1.0
    %v173 = vadd.f32 %v167, 1.0
    %v174 = vadd.f32 %v169, 1.0
    %v175 = vadd.f32 %v171, 1.0
    %v176 = vrcp.pop %v172
    %v177 = vmul.f32 1.0, %v176
    %v178 = vrcp.pop %v173
    %v179 = vmul.f32 1.0, %v178
    %v180 = vrcp.pop %v174
    %v181 = vmul.f32 1.0, %v180
    %v182 = vrcp.pop %v175
    %v183 = vmul.f32 1.0, %v182
    %185 = vrot.lane.b32.xlu0 %v61, 32
    %v186 = vpop.permute.xlu0 %185
    %v188 = vmul.f32 %v177, %v186
    %v189 = vmul.f32 %v179, %v186
    %v190 = vmul.f32 %v181, %v186
    %v191 = vmul.f32 %v183, %v186
    %196 = vrot.lane.b32.xlu0 %v188, 64
    %v197 = vpop.permute.xlu0 %196
    %198 = vrot.lane.b32.xlu0 %v189, 64
    %v199 = vpop.permute.xlu0 %198
    %200 = vrot.lane.b32.xlu0 %v190, 64
    %v201 = vpop.permute.xlu0 %200
    %202 = vrot.lane.b32.xlu0 %v191, 64
    %v203 = vpop.permute.xlu0 %202
    %v208 = vadd.f32 %v142, %v197
    %v209 = vadd.f32 %v147, %v199
    %v210 = vadd.f32 %v152, %v201
    %v211 = vadd.f32 %v157, %v203
    %v212 = vtanh.pop %v208
    %v213 = vtanh.pop %v209
    %v214 = vtanh.pop %v210
    %v215 = vtanh.pop %v211
    %v216 = vsub.f32 1.0, %v177
    %v217 = vsub.f32 1.0, %v179
    %v218 = vsub.f32 1.0, %v181
    %v219 = vsub.f32 1.0, %v183
    %224 = vrot.lane.b32.xlu0 %v212, 96
    %v225 = vpop.permute.xlu0 %224
    %226 = vrot.lane.b32.xlu0 %v213, 96
    %v227 = vpop.permute.xlu0 %226
    %228 = vrot.lane.b32.xlu0 %v214, 96
    %v229 = vpop.permute.xlu0 %228
    %230 = vrot.lane.b32.xlu0 %v215, 96
    %v231 = vpop.permute.xlu0 %230
    %v236 = vmul.f32 %v216, %v225
    %v237 = vmul.f32 %v217, %v227
    %v238 = vmul.f32 %v218, %v229
    %v239 = vmul.f32 %v219, %v231
    %v240 = vld [vmem:[#allocation6] sm:$0xff]
    %v241 = vld [vmem:[#allocation6 + $0x10] sm:$0xff]
    %v242 = vld [vmem:[#allocation6 + $0x20] sm:$0xff]
    %v243 = vld [vmem:[#allocation6 + $0x30] sm:$0xff]
    %v244 = vld [vmem:[%s2 + $0x1] sm:$0x1]
    %v245 = vlaneseq
    %v246 = vshrl.u32 %v245, 7
    %v247 = vsub.s32 0, %v246
    %v248 = vrot.slane %v244, %v247
    %253 = vrot.lane.b32.xlu0 %v236, 96
    %v254 = vpop.permute.xlu0 %253
    %255 = vrot.lane.b32.xlu0 %v237, 96
    %v256 = vpop.permute.xlu0 %255
    %257 = vrot.lane.b32.xlu0 %v238, 96
    %v258 = vpop.permute.xlu0 %257
    %259 = vrot.lane.b32.xlu0 %v239, 96
    %v260 = vpop.permute.xlu0 %259
    %vm261 = vcmask 261120
    %v262 = vsel %vm261, %v254, 0
    %v264 = vsel %vm261, %v256, 0
    %v266 = vsel %vm261, %v258, 0
    %v268 = vsel %vm261, %v260, 0
    %270 = vmatprep.subr.mxu0 0.0
    %271 = vmatpush1.msra.mxu0 0.0
    %272 = vmatprep.subr.mxu0 0.0
    %273 = vmatpush1.msra.mxu0 0.0
    %274 = vmatprep.subr.mxu0 0.0
    %275 = vmatpush1.msra.mxu0 0.0
    %276 = vmatprep.subr.mxu0 0.0
    %277 = vmatpush1.msra.mxu0 0.0
    %278 = vmatprep.subr.mxu0 0.0
    %279 = vmatpush1.msra.mxu0 0.0
    %280 = vmatprep.subr.mxu0 0.0
    %281 = vmatpush1.msra.mxu0 0.0
    %282 = vmatprep.subr.mxu0 0.0
    %283 = vmatpush1.msra.mxu0 0.0
    %284 = vmatprep.subr.mxu0 0.0
    %285 = vmatpush1.msra.mxu0 0.0
    %286 = vmatprep.subr.mxu0 0.0
    %287 = vmatpush1.msra.mxu0 0.0
    %288 = vmatprep.subr.mxu0 0.0
    %289 = vmatpush1.msra.mxu0 0.0
    %290 = vmatprep.subr.mxu0 0.0
    %291 = vmatpush1.msra.mxu0 0.0
    %292 = vmatprep.subr.mxu0 0.0
    %293 = vmatpush1.msra.mxu0 0.0
    %294 = vmatprep.subr.mxu0 0.0
    %295 = vmatpush1.msra.mxu0 %v243
    %296 = vmatprep.subr.mxu0 0.0
    %297 = vmatpush1.msra.mxu0 %v242
    %298 = vmatprep.subr.mxu0 0.0
    %299 = vmatpush1.msra.mxu0 %v241
    %300 = vmatprep.subr.mxu0 0.0
    %301 = vmatpush1.msra.mxu0 %v240
    %302 = vmatprep.subr.mxu0 0.0
    %303 = vmatpush2.msra.mxu0 0.0
    %304 = vmatprep.subr.mxu0 0.0
    %305 = vmatpush2.msra.mxu0 0.0
    %306 = vmatprep.subr.mxu0 0.0
    %307 = vmatpush2.msra.mxu0 0.0
    %308 = vmatprep.subr.mxu0 0.0
    %309 = vmatpush2.msra.mxu0 0.0
    %310 = vmatprep.subr.mxu0 0.0
    %311 = vmatpush2.msra.mxu0 0.0
    %312 = vmatprep.subr.mxu0 0.0
    %313 = vmatpush2.msra.mxu0 0.0
    %314 = vmatprep.subr.mxu0 0.0
    %315 = vmatpush2.msra.mxu0 0.0
    %316 = vmatprep.subr.mxu0 0.0
    %317 = vmatpush2.msra.mxu0 0.0
    %318 = vmatprep.subr.mxu0 0.0
    %319 = vmatpush2.msra.mxu0 0.0
    %320 = vmatprep.subr.mxu0 0.0
    %321 = vmatpush2.msra.mxu0 0.0
    %322 = vmatprep.subr.mxu0 0.0
    %323 = vmatpush2.msra.mxu0 0.0
    %324 = vmatprep.subr.mxu0 0.0
    %325 = vmatpush2.msra.mxu0 0.0
    %326 = vmatprep.subr.mxu0 0.0
    %327 = vmatpush2.msra.mxu0 0.0
    %328 = vmatprep.subr.mxu0 0.0
    %329 = vmatpush2.msra.mxu0 0.0
    %330 = vmatprep.subr.mxu0 0.0
    %331 = vmatpush2.msra.mxu0 0.0
    %332 = vmatprep.subr.mxu0 0.0
    %333 = vmatpush2.msra.mxu0 0.0
    %334 = vmatprep.mubr.f32.mxu0 0.0
    %335 = vmatmul.mubr.f32.gmra.mxu0 %v262
    %v336 = vpop.f32.mrf.mxu0
    %v337 = vadd.f32 %v248, %v336
    %v338 = vpop.f32.mrf.mxu0
    %339 = vmatprep.mubr.f32.mxu0 0.0
    %340 = vmatmul.mubr.f32.gmra.mxu0 %v264
    %v341 = vpop.f32.mrf.mxu0
    %v342 = vadd.f32 %v248, %v341
    %v343 = vpop.f32.mrf.mxu0
    %344 = vmatprep.mubr.f32.mxu0 0.0
    %345 = vmatmul.mubr.f32.gmra.mxu0 %v266
    %v346 = vpop.f32.mrf.mxu0
    %v347 = vadd.f32 %v248, %v346
    %v348 = vpop.f32.mrf.mxu0
    %349 = vmatprep.mubr.f32.mxu0 0.0
    %350 = vmatmul.mubr.f32.gmra.mxu0 %v268
    %v351 = vpop.f32.mrf.mxu0
    %v352 = vadd.f32 %v248, %v351
    %v353 = vpop.f32.mrf.mxu0
    %354 = vdwg.mxu0
    %v355 = vxor.u32 %v337, 2147483648
    %v356 = vxor.u32 %v342, 2147483648
    %v357 = vxor.u32 %v347, 2147483648
    %v358 = vxor.u32 %v352, 2147483648
    %v359 = vmul.f32 %v355, 1.442695
    %v360 = vpow.pop %v359
    %v361 = vmul.f32 %v356, 1.442695
    %v362 = vpow.pop %v361
    %v363 = vmul.f32 %v357, 1.442695
    %v364 = vpow.pop %v363
    %v365 = vmul.f32 %v358, 1.442695
    %v366 = vpow.pop %v365
    %v367 = vadd.f32 %v360, 1.0
    %v368 = vadd.f32 %v362, 1.0
    %v369 = vadd.f32 %v364, 1.0
    %v370 = vadd.f32 %v366, 1.0
    %v371 = vrcp.pop %v367
    %v372 = vmul.f32 1.0, %v371
    %v373 = vrcp.pop %v368
    %v374 = vmul.f32 1.0, %v373
    %v375 = vrcp.pop %v369
    %v376 = vmul.f32 1.0, %v375
    %v377 = vrcp.pop %v370
    %v378 = vmul.f32 1.0, %v377
    %380 = vrot.lane.b32.xlu0 %v248, 32
    %v381 = vpop.permute.xlu0 %380
    %v383 = vmul.f32 %v372, %v381
    %v384 = vmul.f32 %v374, %v381
    %v385 = vmul.f32 %v376, %v381
    %v386 = vmul.f32 %v378, %v381
    %391 = vrot.lane.b32.xlu0 %v383, 64
    %v392 = vpop.permute.xlu0 %391
    %393 = vrot.lane.b32.xlu0 %v384, 64
    %v394 = vpop.permute.xlu0 %393
    %395 = vrot.lane.b32.xlu0 %v385, 64
    %v396 = vpop.permute.xlu0 %395
    %397 = vrot.lane.b32.xlu0 %v386, 64
    %v398 = vpop.permute.xlu0 %397
    %v403 = vadd.f32 %v337, %v392
    %v404 = vadd.f32 %v342, %v394
    %v405 = vadd.f32 %v347, %v396
    %v406 = vadd.f32 %v352, %v398
    %v407 = vtanh.pop %v403
    %v408 = vtanh.pop %v404
    %v409 = vtanh.pop %v405
    %v410 = vtanh.pop %v406
    %v411 = vsub.f32 1.0, %v372
    %v412 = vsub.f32 1.0, %v374
    %v413 = vsub.f32 1.0, %v376
    %v414 = vsub.f32 1.0, %v378
    %419 = vrot.lane.b32.xlu0 %v407, 96
    %v420 = vpop.permute.xlu0 %419
    %421 = vrot.lane.b32.xlu0 %v408, 96
    %v422 = vpop.permute.xlu0 %421
    %423 = vrot.lane.b32.xlu0 %v409, 96
    %v424 = vpop.permute.xlu0 %423
    %425 = vrot.lane.b32.xlu0 %v410, 96
    %v426 = vpop.permute.xlu0 %425
    %v431 = vmul.f32 %v411, %v420
    %v432 = vmul.f32 %v412, %v422
    %v433 = vmul.f32 %v413, %v424
    %v434 = vmul.f32 %v414, %v426
    %v435 = vld [vmem:[%s2 + $0x2] sm:$0x1]
    %v436 = vlaneseq
    %v437 = vshrl.u32 %v436, 7
    %v438 = vsub.s32 0, %v437
    %v439 = vrot.slane %v435, %v438
    %444 = vrot.lane.b32.xlu0 %v431, 96
    %v445 = vpop.permute.xlu0 %444
    %446 = vrot.lane.b32.xlu0 %v432, 96
    %v447 = vpop.permute.xlu0 %446
    %448 = vrot.lane.b32.xlu0 %v433, 96
    %v449 = vpop.permute.xlu0 %448
    %450 = vrot.lane.b32.xlu0 %v434, 96
    %v451 = vpop.permute.xlu0 %450
    %456 = vrot.lane.b32.xlu0 %v240, 32
    %v457 = vpop.permute.xlu0 %456
    %458 = vrot.lane.b32.xlu0 %v241, 32
    %v459 = vpop.permute.xlu0 %458
    %460 = vrot.lane.b32.xlu0 %v242, 32
    %v461 = vpop.permute.xlu0 %460
    %462 = vrot.lane.b32.xlu0 %v243, 32
    %v463 = vpop.permute.xlu0 %462
    %v468 = vsel %vm261, %v445, 0
    %v470 = vsel %vm261, %v447, 0
    %v472 = vsel %vm261, %v449, 0
    %v474 = vsel %vm261, %v451, 0
    %476 = vmatprep.subr.mxu0 0.0
    %477 = vmatpush1.msra.mxu0 0.0
    %478 = vmatprep.subr.mxu0 0.0
    %479 = vmatpush1.msra.mxu0 0.0
    %480 = vmatprep.subr.mxu0 0.0
    %481 = vmatpush1.msra.mxu0 0.0
    %482 = vmatprep.subr.mxu0 0.0
    %483 = vmatpush1.msra.mxu0 0.0
    %484 = vmatprep.subr.mxu0 0.0
    %485 = vmatpush1.msra.mxu0 0.0
    %486 = vmatprep.subr.mxu0 0.0
    %487 = vmatpush1.msra.mxu0 0.0
    %488 = vmatprep.subr.mxu0 0.0
    %489 = vmatpush1.msra.mxu0 0.0
    %490 = vmatprep.subr.mxu0 0.0
    %491 = vmatpush1.msra.mxu0 0.0
    %492 = vmatprep.subr.mxu0 0.0
    %493 = vmatpush1.msra.mxu0 0.0
    %494 = vmatprep.subr.mxu0 0.0
    %495 = vmatpush1.msra.mxu0 0.0
    %496 = vmatprep.subr.mxu0 0.0
    %497 = vmatpush1.msra.mxu0 0.0
    %498 = vmatprep.subr.mxu0 0.0
    %499 = vmatpush1.msra.mxu0 0.0
    %500 = vmatprep.subr.mxu0 0.0
    %501 = vmatpush1.msra.mxu0 %v463
    %502 = vmatprep.subr.mxu0 0.0
    %503 = vmatpush1.msra.mxu0 %v461
    %504 = vmatprep.subr.mxu0 0.0
    %505 = vmatpush1.msra.mxu0 %v459
    %506 = vmatprep.subr.mxu0 0.0
    %507 = vmatpush1.msra.mxu0 %v457
    %508 = vmatprep.subr.mxu0 0.0
    %509 = vmatpush2.msra.mxu0 0.0
    %510 = vmatprep.subr.mxu0 0.0
    %511 = vmatpush2.msra.mxu0 0.0
    %512 = vmatprep.subr.mxu0 0.0
    %513 = vmatpush2.msra.mxu0 0.0
    %514 = vmatprep.subr.mxu0 0.0
    %515 = vmatpush2.msra.mxu0 0.0
    %516 = vmatprep.subr.mxu0 0.0
    %517 = vmatpush2.msra.mxu0 0.0
    %518 = vmatprep.subr.mxu0 0.0
    %519 = vmatpush2.msra.mxu0 0.0
    %520 = vmatprep.subr.mxu0 0.0
    %521 = vmatpush2.msra.mxu0 0.0
    %522 = vmatprep.subr.mxu0 0.0
    %523 = vmatpush2.msra.mxu0 0.0
    %524 = vmatprep.subr.mxu0 0.0
    %525 = vmatpush2.msra.mxu0 0.0
    %526 = vmatprep.subr.mxu0 0.0
    %527 = vmatpush2.msra.mxu0 0.0
    %528 = vmatprep.subr.mxu0 0.0
    %529 = vmatpush2.msra.mxu0 0.0
    %530 = vmatprep.subr.mxu0 0.0
    %531 = vmatpush2.msra.mxu0 0.0
    %532 = vmatprep.subr.mxu0 0.0
    %533 = vmatpush2.msra.mxu0 0.0
    %534 = vmatprep.subr.mxu0 0.0
    %535 = vmatpush2.msra.mxu0 0.0
    %536 = vmatprep.subr.mxu0 0.0
    %537 = vmatpush2.msra.mxu0 0.0
    %538 = vmatprep.subr.mxu0 0.0
    %539 = vmatpush2.msra.mxu0 0.0
    %540 = vmatprep.mubr.f32.mxu0 0.0
    %541 = vmatmul.mubr.f32.gmra.mxu0 %v468
    %v542 = vpop.f32.mrf.mxu0
    %v543 = vadd.f32 %v439, %v542
    %v544 = vpop.f32.mrf.mxu0
    %545 = vmatprep.mubr.f32.mxu0 0.0
    %546 = vmatmul.mubr.f32.gmra.mxu0 %v470
    %v547 = vpop.f32.mrf.mxu0
    %v548 = vadd.f32 %v439, %v547
    %v549 = vpop.f32.mrf.mxu0
    %550 = vmatprep.mubr.f32.mxu0 0.0
    %551 = vmatmul.mubr.f32.gmra.mxu0 %v472
    %v552 = vpop.f32.mrf.mxu0
    %v553 = vadd.f32 %v439, %v552
    %v554 = vpop.f32.mrf.mxu0
    %555 = vmatprep.mubr.f32.mxu0 0.0
    %556 = vmatmul.mubr.f32.gmra.mxu0 %v474
    %v557 = vpop.f32.mrf.mxu0
    %v558 = vadd.f32 %v439, %v557
    %v559 = vpop.f32.mrf.mxu0
    %560 = vdwg.mxu0
    %s561 = sld [smem:[#allocation2]]
    %vm562 = vcmp.ge.f32.partialorder %v543, 0.0
    %vm563 = vcmp.ge.f32.partialorder %v548, 0.0
    %vm564 = vcmp.ge.f32.partialorder %v553, 0.0
    %vm565 = vcmp.ge.f32.partialorder %v558, 0.0
    %v566 = vstv %s561
    %v567 = vmul.f32 %v566, %v543
    %v568 = vmul.f32 %v566, %v548
    %v569 = vmul.f32 %v566, %v553
    %v570 = vmul.f32 %v566, %v558
    %v571 = vsel %vm562, %v543, %v567
    %v572 = vsel %vm563, %v548, %v568
    %v573 = vsel %vm564, %v553, %v569
    %v574 = vsel %vm565, %v558, %v570
    %v575 = vld [vmem:[#allocation6 + $0x8] sm:$0xff]
    %v576 = vld [vmem:[#allocation6 + $0x18] sm:$0xff]
    %v577 = vld [vmem:[#allocation6 + $0x28] sm:$0xff]
    %v578 = vld [vmem:[#allocation6 + $0x38] sm:$0xff]
    %580 = vrot.lane.b32.xlu0 %v439, 96
    %v581 = vpop.permute.xlu0 %580
    %v584 = vsel %vm261, %v571, 0
    %v587 = vsel %vm261, %v572, 0
    %v590 = vsel %vm261, %v573, 0
    %v593 = vsel %vm261, %v574, 0
    %595 = vmatprep.subr.mxu0 0.0
    %596 = vmatpush1.msra.mxu0 0.0
    %597 = vmatprep.subr.mxu0 0.0
    %598 = vmatpush1.msra.mxu0 0.0
    %599 = vmatprep.subr.mxu0 0.0
    %600 = vmatpush1.msra.mxu0 0.0
    %601 = vmatprep.subr.mxu0 0.0
    %602 = vmatpush1.msra.mxu0 0.0
    %603 = vmatprep.subr.mxu0 0.0
    %604 = vmatpush1.msra.mxu0 0.0
    %605 = vmatprep.subr.mxu0 0.0
    %606 = vmatpush1.msra.mxu0 0.0
    %607 = vmatprep.subr.mxu0 0.0
    %608 = vmatpush1.msra.mxu0 0.0
    %609 = vmatprep.subr.mxu0 0.0
    %610 = vmatpush1.msra.mxu0 0.0
    %611 = vmatprep.subr.mxu0 0.0
    %612 = vmatpush1.msra.mxu0 0.0
    %613 = vmatprep.subr.mxu0 0.0
    %614 = vmatpush1.msra.mxu0 0.0
    %615 = vmatprep.subr.mxu0 0.0
    %616 = vmatpush1.msra.mxu0 0.0
    %617 = vmatprep.subr.mxu0 0.0
    %618 = vmatpush1.msra.mxu0 0.0
    %619 = vmatprep.subr.mxu0 0.0
    %620 = vmatpush1.msra.mxu0 %v578
    %621 = vmatprep.subr.mxu0 0.0
    %622 = vmatpush1.msra.mxu0 %v577
    %623 = vmatprep.subr.mxu0 0.0
    %624 = vmatpush1.msra.mxu0 %v576
    %625 = vmatprep.subr.mxu0 0.0
    %626 = vmatpush1.msra.mxu0 %v575
    %627 = vmatprep.subr.mxu0 0.0
    %628 = vmatpush2.msra.mxu0 0.0
    %629 = vmatprep.subr.mxu0 0.0
    %630 = vmatpush2.msra.mxu0 0.0
    %631 = vmatprep.subr.mxu0 0.0
    %632 = vmatpush2.msra.mxu0 0.0
    %633 = vmatprep.subr.mxu0 0.0
    %634 = vmatpush2.msra.mxu0 0.0
    %635 = vmatprep.subr.mxu0 0.0
    %636 = vmatpush2.msra.mxu0 0.0
    %637 = vmatprep.subr.mxu0 0.0
    %638 = vmatpush2.msra.mxu0 0.0
    %639 = vmatprep.subr.mxu0 0.0
    %640 = vmatpush2.msra.mxu0 0.0
    %641 = vmatprep.subr.mxu0 0.0
    %642 = vmatpush2.msra.mxu0 0.0
    %643 = vmatprep.subr.mxu0 0.0
    %644 = vmatpush2.msra.mxu0 0.0
    %645 = vmatprep.subr.mxu0 0.0
    %646 = vmatpush2.msra.mxu0 0.0
    %647 = vmatprep.subr.mxu0 0.0
    %648 = vmatpush2.msra.mxu0 0.0
    %649 = vmatprep.subr.mxu0 0.0
    %650 = vmatpush2.msra.mxu0 0.0
    %651 = vmatprep.subr.mxu0 0.0
    %652 = vmatpush2.msra.mxu0 0.0
    %653 = vmatprep.subr.mxu0 0.0
    %654 = vmatpush2.msra.mxu0 0.0
    %655 = vmatprep.subr.mxu0 0.0
    %656 = vmatpush2.msra.mxu0 0.0
    %657 = vmatprep.subr.mxu0 0.0
    %658 = vmatpush2.msra.mxu0 0.0
    %659 = vmatprep.mubr.f32.mxu0 0.0
    %660 = vmatmul.mubr.f32.gmra.mxu0 %v584
    %v661 = vpop.f32.mrf.mxu0
    %v662 = vadd.f32 %v581, %v661
    %v663 = vpop.f32.mrf.mxu0
    %664 = vmatprep.mubr.f32.mxu0 0.0
    %665 = vmatmul.mubr.f32.gmra.mxu0 %v587
    %v666 = vpop.f32.mrf.mxu0
    %v667 = vadd.f32 %v581, %v666
    %v668 = vpop.f32.mrf.mxu0
    %669 = vmatprep.mubr.f32.mxu0 0.0
    %670 = vmatmul.mubr.f32.gmra.mxu0 %v590
    %v671 = vpop.f32.mrf.mxu0
    %v672 = vadd.f32 %v581, %v671
    %v673 = vpop.f32.mrf.mxu0
    %674 = vmatprep.mubr.f32.mxu0 0.0
    %675 = vmatmul.mubr.f32.gmra.mxu0 %v593
    %v676 = vpop.f32.mrf.mxu0
    %v677 = vadd.f32 %v581, %v676
    %v678 = vpop.f32.mrf.mxu0
    %679 = vdwg.mxu0
    %s680 = sld [smem:[#allocation2 + $0x1]]
    %vm681 = vcmp.ge.f32.partialorder %v662, 0.0
    %vm682 = vcmp.ge.f32.partialorder %v667, 0.0
    %vm683 = vcmp.ge.f32.partialorder %v672, 0.0
    %vm684 = vcmp.ge.f32.partialorder %v677, 0.0
    %v685 = vstv %s680
    %v686 = vmul.f32 %v685, %v662
    %v687 = vmul.f32 %v685, %v667
    %v688 = vmul.f32 %v685, %v672
    %v689 = vmul.f32 %v685, %v677
    %v690 = vsel %vm681, %v662, %v686
    %v691 = vsel %vm682, %v667, %v687
    %v692 = vsel %vm683, %v672, %v688
    %v693 = vsel %vm684, %v677, %v689
    %698 = vrot.lane.b32.xlu0 %v575, 96
    %v699 = vpop.permute.xlu0 %698
    %700 = vrot.lane.b32.xlu0 %v576, 96
    %v701 = vpop.permute.xlu0 %700
    %702 = vrot.lane.b32.xlu0 %v577, 96
    %v703 = vpop.permute.xlu0 %702
    %704 = vrot.lane.b32.xlu0 %v578, 96
    %v705 = vpop.permute.xlu0 %704
    %710 = vrot.lane.b32.xlu0 %v439, 64
    %v711 = vpop.permute.xlu0 %710
    %v714 = vsel %vm261, %v690, 0
    %v717 = vsel %vm261, %v691, 0
    %v720 = vsel %vm261, %v692, 0
    %v723 = vsel %vm261, %v693, 0
    %725 = vmatprep.subr.mxu0 0.0
    %726 = vmatpush1.msra.mxu0 0.0
    %727 = vmatprep.subr.mxu0 0.0
    %728 = vmatpush1.msra.mxu0 0.0
    %729 = vmatprep.subr.mxu0 0.0
    %730 = vmatpush1.msra.mxu0 0.0
    %731 = vmatprep.subr.mxu0 0.0
    %732 = vmatpush1.msra.mxu0 0.0
    %733 = vmatprep.subr.mxu0 0.0
    %734 = vmatpush1.msra.mxu0 0.0
    %735 = vmatprep.subr.mxu0 0.0
    %736 = vmatpush1.msra.mxu0 0.0
    %737 = vmatprep.subr.mxu0 0.0
    %738 = vmatpush1.msra.mxu0 0.0
    %739 = vmatprep.subr.mxu0 0.0
    %740 = vmatpush1.msra.mxu0 0.0
    %741 = vmatprep.subr.mxu0 0.0
    %742 = vmatpush1.msra.mxu0 0.0
    %743 = vmatprep.subr.mxu0 0.0
    %744 = vmatpush1.msra.mxu0 0.0
    %745 = vmatprep.subr.mxu0 0.0
    %746 = vmatpush1.msra.mxu0 0.0
    %747 = vmatprep.subr.mxu0 0.0
    %748 = vmatpush1.msra.mxu0 0.0
    %749 = vmatprep.subr.mxu0 0.0
    %750 = vmatpush1.msra.mxu0 %v705
    %751 = vmatprep.subr.mxu0 0.0
    %752 = vmatpush1.msra.mxu0 %v703
    %753 = vmatprep.subr.mxu0 0.0
    %754 = vmatpush1.msra.mxu0 %v701
    %755 = vmatprep.subr.mxu0 0.0
    %756 = vmatpush1.msra.mxu0 %v699
    %757 = vmatprep.subr.mxu0 0.0
    %758 = vmatpush2.msra.mxu0 0.0
    %759 = vmatprep.subr.mxu0 0.0
    %760 = vmatpush2.msra.mxu0 0.0
    %761 = vmatprep.subr.mxu0 0.0
    %762 = vmatpush2.msra.mxu0 0.0
    %763 = vmatprep.subr.mxu0 0.0
    %764 = vmatpush2.msra.mxu0 0.0
    %765 = vmatprep.subr.mxu0 0.0
    %766 = vmatpush2.msra.mxu0 0.0
    %767 = vmatprep.subr.mxu0 0.0
    %768 = vmatpush2.msra.mxu0 0.0
    %769 = vmatprep.subr.mxu0 0.0
    %770 = vmatpush2.msra.mxu0 0.0
    %771 = vmatprep.subr.mxu0 0.0
    %772 = vmatpush2.msra.mxu0 0.0
    %773 = vmatprep.subr.mxu0 0.0
    %774 = vmatpush2.msra.mxu0 0.0
    %775 = vmatprep.subr.mxu0 0.0
    %776 = vmatpush2.msra.mxu0 0.0
    %777 = vmatprep.subr.mxu0 0.0
    %778 = vmatpush2.msra.mxu0 0.0
    %779 = vmatprep.subr.mxu0 0.0
    %780 = vmatpush2.msra.mxu0 0.0
    %781 = vmatprep.subr.mxu0 0.0
    %782 = vmatpush2.msra.mxu0 0.0
    %783 = vmatprep.subr.mxu0 0.0
    %784 = vmatpush2.msra.mxu0 0.0
    %785 = vmatprep.subr.mxu0 0.0
    %786 = vmatpush2.msra.mxu0 0.0
    %787 = vmatprep.subr.mxu0 0.0
    %788 = vmatpush2.msra.mxu0 0.0
    %789 = vmatprep.mubr.f32.mxu0 0.0
    %790 = vmatmul.mubr.f32.gmra.mxu0 %v714
    %v791 = vpop.f32.mrf.mxu0
    %v792 = vadd.f32 %v711, %v791
    %v793 = vpop.f32.mrf.mxu0
    %794 = vmatprep.mubr.f32.mxu0 0.0
    %795 = vmatmul.mubr.f32.gmra.mxu0 %v717
    %v796 = vpop.f32.mrf.mxu0
    %v797 = vadd.f32 %v711, %v796
    %v798 = vpop.f32.mrf.mxu0
    %799 = vmatprep.mubr.f32.mxu0 0.0
    %800 = vmatmul.mubr.f32.gmra.mxu0 %v720
    %v801 = vpop.f32.mrf.mxu0
    %v802 = vadd.f32 %v711, %v801
    %v803 = vpop.f32.mrf.mxu0
    %804 = vmatprep.mubr.f32.mxu0 0.0
    %805 = vmatmul.mubr.f32.gmra.mxu0 %v723
    %v806 = vpop.f32.mrf.mxu0
    %v807 = vadd.f32 %v711, %v806
    %v808 = vpop.f32.mrf.mxu0
    %809 = vdwg.mxu0
    %v810 = vmul.f32 %v792, 0.5
    %v811 = vmul.f32 %v797, 0.5
    %v812 = vmul.f32 %v802, 0.5
    %v813 = vmul.f32 %v807, 0.5
    %v814 = vmul.f32 %v810, 1.442695
    %v815 = vpow.pop %v814
    %v816 = vmul.f32 %v811, 1.442695
    %v817 = vpow.pop %v816
    %v818 = vmul.f32 %v812, 1.442695
    %v819 = vpow.pop %v818
    %v820 = vmul.f32 %v813, 1.442695
    %v821 = vpow.pop %v820
    %826 = vrot.lane.b32.xlu0 %v815, 8
    %v827 = vpop.permute.xlu0 %826
    %828 = vrot.lane.b32.xlu0 %v817, 8
    %v829 = vpop.permute.xlu0 %828
    %830 = vrot.lane.b32.xlu0 %v819, 8
    %v831 = vpop.permute.xlu0 %830
    %832 = vrot.lane.b32.xlu0 %v821, 8
    %v833 = vpop.permute.xlu0 %832
    %v838 = vmul.f32 %v51, %v827
    %v839 = vmul.f32 %v52, %v829
    %v840 = vmul.f32 %v53, %v831
    %v841 = vmul.f32 %v54, %v833
    %846 = vrot.lane.b32.xlu0 %v838, 112
    %v847 = vpop.permute.xlu0 %846
    %848 = vrot.lane.b32.xlu0 %v839, 112
    %v849 = vpop.permute.xlu0 %848
    %850 = vrot.lane.b32.xlu0 %v840, 112
    %v851 = vpop.permute.xlu0 %850
    %852 = vrot.lane.b32.xlu0 %v841, 112
    %v853 = vpop.permute.xlu0 %852
    %v858 = vadd.f32 %v792, %v847
    %v859 = vadd.f32 %v797, %v849
    %v860 = vadd.f32 %v802, %v851
    %v861 = vadd.f32 %v807, %v853
    %v862 = vld [vmem:[%s5] sm:$0xff]
    %v863 = vld [vmem:[%s2 + $0x3] sm:$0x1]
    %v864 = vlaneseq
    %v865 = vshrl.u32 %v864, 7
    %v866 = vsub.s32 0, %v865
    %v867 = vrot.slane %v863, %v866
    %vm868 = vcmask 64512
    %v870 = vsel %vm868, %v858, 0
    %v873 = vsel %vm868, %v859, 0
    %v876 = vsel %vm868, %v860, 0
    %v879 = vsel %vm868, %v861, 0
    %881 = vmatprep.subr.mxu0 0.0
    %882 = vmatpush1.msra.mxu0 0.0
    %883 = vmatprep.subr.mxu0 0.0
    %884 = vmatpush1.msra.mxu0 0.0
    %885 = vmatprep.subr.mxu0 0.0
    %886 = vmatpush1.msra.mxu0 0.0
    %887 = vmatprep.subr.mxu0 0.0
    %888 = vmatpush1.msra.mxu0 0.0
    %889 = vmatprep.subr.mxu0 0.0
    %890 = vmatpush1.msra.mxu0 0.0
    %891 = vmatprep.subr.mxu0 0.0
    %892 = vmatpush1.msra.mxu0 0.0
    %893 = vmatprep.subr.mxu0 0.0
    %894 = vmatpush1.msra.mxu0 0.0
    %895 = vmatprep.subr.mxu0 0.0
    %896 = vmatpush1.msra.mxu0 0.0
    %897 = vmatprep.subr.mxu0 0.0
    %898 = vmatpush1.msra.mxu0 0.0
    %899 = vmatprep.subr.mxu0 0.0
    %900 = vmatpush1.msra.mxu0 0.0
    %901 = vmatprep.subr.mxu0 0.0
    %902 = vmatpush1.msra.mxu0 0.0
    %903 = vmatprep.subr.mxu0 0.0
    %904 = vmatpush1.msra.mxu0 0.0
    %905 = vmatprep.subr.mxu0 0.0
    %906 = vmatpush1.msra.mxu0 0.0
    %907 = vmatprep.subr.mxu0 0.0
    %908 = vmatpush1.msra.mxu0 0.0
    %909 = vmatprep.subr.mxu0 0.0
    %910 = vmatpush1.msra.mxu0 0.0
    %911 = vmatprep.subr.mxu0 0.0
    %912 = vmatpush1.msra.mxu0 %v862
    %913 = vmatprep.subr.mxu0 0.0
    %914 = vmatpush2.msra.mxu0 0.0
    %915 = vmatprep.subr.mxu0 0.0
    %916 = vmatpush2.msra.mxu0 0.0
    %917 = vmatprep.subr.mxu0 0.0
    %918 = vmatpush2.msra.mxu0 0.0
    %919 = vmatprep.subr.mxu0 0.0
    %920 = vmatpush2.msra.mxu0 0.0
    %921 = vmatprep.subr.mxu0 0.0
    %922 = vmatpush2.msra.mxu0 0.0
    %923 = vmatprep.subr.mxu0 0.0
    %924 = vmatpush2.msra.mxu0 0.0
    %925 = vmatprep.subr.mxu0 0.0
    %926 = vmatpush2.msra.mxu0 0.0
    %927 = vmatprep.subr.mxu0 0.0
    %928 = vmatpush2.msra.mxu0 0.0
    %929 = vmatprep.subr.mxu0 0.0
    %930 = vmatpush2.msra.mxu0 0.0
    %931 = vmatprep.subr.mxu0 0.0
    %932 = vmatpush2.msra.mxu0 0.0
    %933 = vmatprep.subr.mxu0 0.0
    %934 = vmatpush2.msra.mxu0 0.0
    %935 = vmatprep.subr.mxu0 0.0
    %936 = vmatpush2.msra.mxu0 0.0
    %937 = vmatprep.subr.mxu0 0.0
    %938 = vmatpush2.msra.mxu0 0.0
    %939 = vmatprep.subr.mxu0 0.0
    %940 = vmatpush2.msra.mxu0 0.0
    %941 = vmatprep.subr.mxu0 0.0
    %942 = vmatpush2.msra.mxu0 0.0
    %943 = vmatprep.subr.mxu0 0.0
    %944 = vmatpush2.msra.mxu0 0.0
    %945 = vmatprep.mubr.f32.mxu0 0.0
    %946 = vmatmul.mubr.f32.gmra.mxu0 %v870
    %v947 = vpop.f32.mrf.mxu0
    %v948 = vadd.f32 %v867, %v947
    %v949 = vpop.f32.mrf.mxu0
    %950 = vmatprep.mubr.f32.mxu0 0.0
    %951 = vmatmul.mubr.f32.gmra.mxu0 %v873
    %v952 = vpop.f32.mrf.mxu0
    %v953 = vadd.f32 %v867, %v952
    %v954 = vpop.f32.mrf.mxu0
    %955 = vmatprep.mubr.f32.mxu0 0.0
    %956 = vmatmul.mubr.f32.gmra.mxu0 %v876
    %v957 = vpop.f32.mrf.mxu0
    %v958 = vadd.f32 %v867, %v957
    %v959 = vpop.f32.mrf.mxu0
    %960 = vmatprep.mubr.f32.mxu0 0.0
    %961 = vmatmul.mubr.f32.gmra.mxu0 %v879
    %v962 = vpop.f32.mrf.mxu0
    %v963 = vadd.f32 %v867, %v962
    %v964 = vpop.f32.mrf.mxu0
    %965 = vdwg.mxu0
    %s966 = sld [smem:[#allocation2 + $0x2]]
    %vm967 = vcmp.ge.f32.partialorder %v948, 0.0
    %vm968 = vcmp.ge.f32.partialorder %v953, 0.0
    %vm969 = vcmp.ge.f32.partialorder %v958, 0.0
    %vm970 = vcmp.ge.f32.partialorder %v963, 0.0
    %v971 = vstv %s966
    %v972 = vmul.f32 %v971, %v948
    %v973 = vmul.f32 %v971, %v953
    %v974 = vmul.f32 %v971, %v958
    %v975 = vmul.f32 %v971, %v963
    %v976 = vsel %vm967, %v948, %v972
    %v977 = vsel %vm968, %v953, %v973
    %v978 = vsel %vm969, %v958, %v974
    %v979 = vsel %vm970, %v963, %v975
    %980 = vrot.lane.b32.xlu0 %v575, 80
    %v981 = vpop.permute.xlu0 %980
    %982 = vrot.lane.b32.xlu0 %v576, 80
    %v983 = vpop.permute.xlu0 %982
    %984 = vrot.lane.b32.xlu0 %v577, 80
    %v985 = vpop.permute.xlu0 %984
    %986 = vrot.lane.b32.xlu0 %v578, 80
    %v987 = vpop.permute.xlu0 %986
    %993 = vrot.lane.b32.xlu0 %v867, 96
    %v994 = vpop.permute.xlu0 %993
    %v997 = vsel %vm261, %v976, 0
    %v1000 = vsel %vm261, %v977, 0
    %v1003 = vsel %vm261, %v978, 0
    %v1006 = vsel %vm261, %v979, 0
    %1008 = vmatprep.subr.mxu0 0.0
    %1009 = vmatpush1.msra.mxu0 0.0
    %1010 = vmatprep.subr.mxu0 0.0
    %1011 = vmatpush1.msra.mxu0 0.0
    %1012 = vmatprep.subr.mxu0 0.0
    %1013 = vmatpush1.msra.mxu0 0.0
    %1014 = vmatprep.subr.mxu0 0.0
    %1015 = vmatpush1.msra.mxu0 0.0
    %1016 = vmatprep.subr.mxu0 0.0
    %1017 = vmatpush1.msra.mxu0 0.0
    %1018 = vmatprep.subr.mxu0 0.0
    %1019 = vmatpush1.msra.mxu0 0.0
    %1020 = vmatprep.subr.mxu0 0.0
    %1021 = vmatpush1.msra.mxu0 0.0
    %1022 = vmatprep.subr.mxu0 0.0
    %1023 = vmatpush1.msra.mxu0 0.0
    %1024 = vmatprep.subr.mxu0 0.0
    %1025 = vmatpush1.msra.mxu0 0.0
    %1026 = vmatprep.subr.mxu0 0.0
    %1027 = vmatpush1.msra.mxu0 0.0
    %1028 = vmatprep.subr.mxu0 0.0
    %1029 = vmatpush1.msra.mxu0 0.0
    %1030 = vmatprep.subr.mxu0 0.0
    %1031 = vmatpush1.msra.mxu0 0.0
    %1032 = vmatprep.subr.mxu0 0.0
    %1033 = vmatpush1.msra.mxu0 %v987
    %1034 = vmatprep.subr.mxu0 0.0
    %1035 = vmatpush1.msra.mxu0 %v985
    %1036 = vmatprep.subr.mxu0 0.0
    %1037 = vmatpush1.msra.mxu0 %v983
    %1038 = vmatprep.subr.mxu0 0.0
    %1039 = vmatpush1.msra.mxu0 %v981
    %1040 = vmatprep.subr.mxu0 0.0
    %1041 = vmatpush2.msra.mxu0 0.0
    %1042 = vmatprep.subr.mxu0 0.0
    %1043 = vmatpush2.msra.mxu0 0.0
    %1044 = vmatprep.subr.mxu0 0.0
    %1045 = vmatpush2.msra.mxu0 0.0
    %1046 = vmatprep.subr.mxu0 0.0
    %1047 = vmatpush2.msra.mxu0 0.0
    %1048 = vmatprep.subr.mxu0 0.0
    %1049 = vmatpush2.msra.mxu0 0.0
    %1050 = vmatprep.subr.mxu0 0.0
    %1051 = vmatpush2.msra.mxu0 0.0
    %1052 = vmatprep.subr.mxu0 0.0
    %1053 = vmatpush2.msra.mxu0 0.0
    %1054 = vmatprep.subr.mxu0 0.0
    %1055 = vmatpush2.msra.mxu0 0.0
    %1056 = vmatprep.subr.mxu0 0.0
    %1057 = vmatpush2.msra.mxu0 0.0
    %1058 = vmatprep.subr.mxu0 0.0
    %1059 = vmatpush2.msra.mxu0 0.0
    %1060 = vmatprep.subr.mxu0 0.0
    %1061 = vmatpush2.msra.mxu0 0.0
    %1062 = vmatprep.subr.mxu0 0.0
    %1063 = vmatpush2.msra.mxu0 0.0
    %1064 = vmatprep.subr.mxu0 0.0
    %1065 = vmatpush2.msra.mxu0 0.0
    %1066 = vmatprep.subr.mxu0 0.0
    %1067 = vmatpush2.msra.mxu0 0.0
    %1068 = vmatprep.subr.mxu0 0.0
    %1069 = vmatpush2.msra.mxu0 0.0
    %1070 = vmatprep.subr.mxu0 0.0
    %1071 = vmatpush2.msra.mxu0 0.0
    %1072 = vmatprep.mubr.f32.mxu0 0.0
    %1073 = vmatmul.mubr.f32.gmra.mxu0 %v997
    %v1074 = vpop.f32.mrf.mxu0
    %v1075 = vadd.f32 %v994, %v1074
    %v1076 = vpop.f32.mrf.mxu0
    %1077 = vmatprep.mubr.f32.mxu0 0.0
    %1078 = vmatmul.mubr.f32.gmra.mxu0 %v1000
    %v1079 = vpop.f32.mrf.mxu0
    %v1080 = vadd.f32 %v994, %v1079
    %v1081 = vpop.f32.mrf.mxu0
    %1082 = vmatprep.mubr.f32.mxu0 0.0
    %1083 = vmatmul.mubr.f32.gmra.mxu0 %v1003
    %v1084 = vpop.f32.mrf.mxu0
    %v1085 = vadd.f32 %v994, %v1084
    %v1086 = vpop.f32.mrf.mxu0
    %1087 = vmatprep.mubr.f32.mxu0 0.0
    %1088 = vmatmul.mubr.f32.gmra.mxu0 %v1006
    %v1089 = vpop.f32.mrf.mxu0
    %v1090 = vadd.f32 %v994, %v1089
    %v1091 = vpop.f32.mrf.mxu0
    %1092 = vdwg.mxu0
    %s1093 = sld [smem:[#allocation2 + $0x3]]
    %vm1094 = vcmp.ge.f32.partialorder %v1075, 0.0
    %vm1095 = vcmp.ge.f32.partialorder %v1080, 0.0
    %vm1096 = vcmp.ge.f32.partialorder %v1085, 0.0
    %vm1097 = vcmp.ge.f32.partialorder %v1090, 0.0
    %v1098 = vstv %s1093
    %v1099 = vmul.f32 %v1098, %v1075
    %v1100 = vmul.f32 %v1098, %v1080
    %v1101 = vmul.f32 %v1098, %v1085
    %v1102 = vmul.f32 %v1098, %v1090
    %v1103 = vsel %vm1094, %v1075, %v1099
    %v1104 = vsel %vm1095, %v1080, %v1100
    %v1105 = vsel %vm1096, %v1085, %v1101
    %v1106 = vsel %vm1097, %v1090, %v1102
    %v1107 = vld [vmem:[%s2 + $0x4] sm:$0x1]
    %v1108 = vlaneseq
    %v1109 = vshrl.u32 %v1108, 7
    %v1110 = vsub.s32 0, %v1109
    %v1111 = vrot.slane %v1107, %v1110
    %1112 = vrot.lane.b32.xlu0 %v575, 48
    %v1113 = vpop.permute.xlu0 %1112
    %1114 = vrot.lane.b32.xlu0 %v576, 48
    %v1115 = vpop.permute.xlu0 %1114
    %1116 = vrot.lane.b32.xlu0 %v577, 48
    %v1117 = vpop.permute.xlu0 %1116
    %1118 = vrot.lane.b32.xlu0 %v578, 48
    %v1119 = vpop.permute.xlu0 %1118
    %v1125 = vsel %vm261, %v1103, 0
    %v1128 = vsel %vm261, %v1104, 0
    %v1131 = vsel %vm261, %v1105, 0
    %v1134 = vsel %vm261, %v1106, 0
    %1136 = vmatprep.subr.mxu0 0.0
    %1137 = vmatpush1.msra.mxu0 0.0
    %1138 = vmatprep.subr.mxu0 0.0
    %1139 = vmatpush1.msra.mxu0 0.0
    %1140 = vmatprep.subr.mxu0 0.0
    %1141 = vmatpush1.msra.mxu0 0.0
    %1142 = vmatprep.subr.mxu0 0.0
    %1143 = vmatpush1.msra.mxu0 0.0
    %1144 = vmatprep.subr.mxu0 0.0
    %1145 = vmatpush1.msra.mxu0 0.0
    %1146 = vmatprep.subr.mxu0 0.0
    %1147 = vmatpush1.msra.mxu0 0.0
    %1148 = vmatprep.subr.mxu0 0.0
    %1149 = vmatpush1.msra.mxu0 0.0
    %1150 = vmatprep.subr.mxu0 0.0
    %1151 = vmatpush1.msra.mxu0 0.0
    %1152 = vmatprep.subr.mxu0 0.0
    %1153 = vmatpush1.msra.mxu0 0.0
    %1154 = vmatprep.subr.mxu0 0.0
    %1155 = vmatpush1.msra.mxu0 0.0
    %1156 = vmatprep.subr.mxu0 0.0
    %1157 = vmatpush1.msra.mxu0 0.0
    %1158 = vmatprep.subr.mxu0 0.0
    %1159 = vmatpush1.msra.mxu0 0.0
    %1160 = vmatprep.subr.mxu0 0.0
    %1161 = vmatpush1.msra.mxu0 %v1119
    %1162 = vmatprep.subr.mxu0 0.0
    %1163 = vmatpush1.msra.mxu0 %v1117
    %1164 = vmatprep.subr.mxu0 0.0
    %1165 = vmatpush1.msra.mxu0 %v1115
    %1166 = vmatprep.subr.mxu0 0.0
    %1167 = vmatpush1.msra.mxu0 %v1113
    %1168 = vmatprep.subr.mxu0 0.0
    %1169 = vmatpush2.msra.mxu0 0.0
    %1170 = vmatprep.subr.mxu0 0.0
    %1171 = vmatpush2.msra.mxu0 0.0
    %1172 = vmatprep.subr.mxu0 0.0
    %1173 = vmatpush2.msra.mxu0 0.0
    %1174 = vmatprep.subr.mxu0 0.0
    %1175 = vmatpush2.msra.mxu0 0.0
    %1176 = vmatprep.subr.mxu0 0.0
    %1177 = vmatpush2.msra.mxu0 0.0
    %1178 = vmatprep.subr.mxu0 0.0
    %1179 = vmatpush2.msra.mxu0 0.0
    %1180 = vmatprep.subr.mxu0 0.0
    %1181 = vmatpush2.msra.mxu0 0.0
    %1182 = vmatprep.subr.mxu0 0.0
    %1183 = vmatpush2.msra.mxu0 0.0
    %1184 = vmatprep.subr.mxu0 0.0
    %1185 = vmatpush2.msra.mxu0 0.0
    %1186 = vmatprep.subr.mxu0 0.0
    %1187 = vmatpush2.msra.mxu0 0.0
    %1188 = vmatprep.subr.mxu0 0.0
    %1189 = vmatpush2.msra.mxu0 0.0
    %1190 = vmatprep.subr.mxu0 0.0
    %1191 = vmatpush2.msra.mxu0 0.0
    %1192 = vmatprep.subr.mxu0 0.0
    %1193 = vmatpush2.msra.mxu0 0.0
    %1194 = vmatprep.subr.mxu0 0.0
    %1195 = vmatpush2.msra.mxu0 0.0
    %1196 = vmatprep.subr.mxu0 0.0
    %1197 = vmatpush2.msra.mxu0 0.0
    %1198 = vmatprep.subr.mxu0 0.0
    %1199 = vmatpush2.msra.mxu0 0.0
    %1200 = vmatprep.mubr.f32.mxu0 0.0
    %1201 = vmatmul.mubr.f32.gmra.mxu0 %v1125
    %v1202 = vpop.f32.mrf.mxu0
    %v1203 = vadd.f32 %v1111, %v1202
    %v1204 = vpop.f32.mrf.mxu0
    %1205 = vmatprep.mubr.f32.mxu0 0.0
    %1206 = vmatmul.mubr.f32.gmra.mxu0 %v1128
    %v1207 = vpop.f32.mrf.mxu0
    %v1208 = vadd.f32 %v1111, %v1207
    %v1209 = vpop.f32.mrf.mxu0
    %1210 = vmatprep.mubr.f32.mxu0 0.0
    %1211 = vmatmul.mubr.f32.gmra.mxu0 %v1131
    %v1212 = vpop.f32.mrf.mxu0
    %v1213 = vadd.f32 %v1111, %v1212
    %v1214 = vpop.f32.mrf.mxu0
    %1215 = vmatprep.mubr.f32.mxu0 0.0
    %1216 = vmatmul.mubr.f32.gmra.mxu0 %v1134
    %v1217 = vpop.f32.mrf.mxu0
    %v1218 = vadd.f32 %v1111, %v1217
    %v1219 = vpop.f32.mrf.mxu0
    %1220 = vdwg.mxu0
    %v1221 = vxor.u32 %v1203, 2147483648
    %v1222 = vxor.u32 %v1208, 2147483648
    %v1223 = vxor.u32 %v1213, 2147483648
    %v1224 = vxor.u32 %v1218, 2147483648
    %v1225 = vmul.f32 %v1221, 1.442695
    %v1226 = vpow.pop %v1225
    %v1227 = vmul.f32 %v1222, 1.442695
    %v1228 = vpow.pop %v1227
    %v1229 = vmul.f32 %v1223, 1.442695
    %v1230 = vpow.pop %v1229
    %v1231 = vmul.f32 %v1224, 1.442695
    %v1232 = vpow.pop %v1231
    %v1233 = vadd.f32 %v1226, 1.0
    %v1234 = vadd.f32 %v1228, 1.0
    %v1235 = vadd.f32 %v1230, 1.0
    %v1236 = vadd.f32 %v1232, 1.0
    %v1237 = vrcp.pop %v1233
    %v1238 = vmul.f32 1.0, %v1237
    %v1239 = vrcp.pop %v1234
    %v1240 = vmul.f32 1.0, %v1239
    %v1241 = vrcp.pop %v1235
    %v1242 = vmul.f32 1.0, %v1241
    %v1243 = vrcp.pop %v1236
    %v1244 = vmul.f32 1.0, %v1243
    %1249 = vrot.lane.b32.xlu0 %v792, 16
    %v1250 = vpop.permute.xlu0 %1249
    %1251 = vrot.lane.b32.xlu0 %v797, 16
    %v1252 = vpop.permute.xlu0 %1251
    %1253 = vrot.lane.b32.xlu0 %v802, 16
    %v1254 = vpop.permute.xlu0 %1253
    %1255 = vrot.lane.b32.xlu0 %v807, 16
    %v1256 = vpop.permute.xlu0 %1255
    %1261 = vrot.lane.b32.xlu0 %v431, 32
    %v1262 = vpop.permute.xlu0 %1261
    %1263 = vrot.lane.b32.xlu0 %v432, 32
    %v1264 = vpop.permute.xlu0 %1263
    %1265 = vrot.lane.b32.xlu0 %v433, 32
    %v1266 = vpop.permute.xlu0 %1265
    %1267 = vrot.lane.b32.xlu0 %v434, 32
    %v1268 = vpop.permute.xlu0 %1267
    %v1273 = vsel %vm62, %v1238, %v1250
    %v1274 = vsel %vm62, %v1240, %v1252
    %v1275 = vsel %vm62, %v1242, %v1254
    %v1276 = vsel %vm62, %v1244, %v1256
    %vm1277 = vcmask 195584
    %v1278 = vsel %vm1277, %v1273, %v1250
    %v1279 = vsel %vm1277, %v1274, %v1252
    %v1280 = vsel %vm1277, %v1275, %v1254
    %v1281 = vsel %vm1277, %v1276, %v1256
    %v1282 = vsel %vm261, %v1278, %v236
    %v1283 = vsel %vm261, %v1279, %v237
    %v1284 = vsel %vm261, %v1280, %v238
    %v1285 = vsel %vm261, %v1281, %v239
    %vm1286 = vcmask 523264
    %v1287 = vsel %vm1286, %v1282, %v1262
    %v1288 = vsel %vm1286, %v1283, %v1264
    %v1289 = vsel %vm1286, %v1284, %v1266
    %v1290 = vsel %vm1286, %v1285, %v1268
    %vm1291 = vcmask 785408
    %v1292 = vsel %vm1291, %v1287, 0.0
    %v1293 = vsel %vm1291, %v1288, 0.0
    %v1294 = vsel %vm1291, %v1289, 0.0
    %v1295 = vsel %vm1291, %v1290, 0.0
    %1296 = vst [vmem:[#allocation7] sm:$0xff] %v1292
    %1297 = vst [vmem:[#allocation7 + $0x8] sm:$0xff] %v1293
    %1298 = vst [vmem:[#allocation7 + $0x10] sm:$0xff] %v1294
    %1299 = vst [vmem:[#allocation7 + $0x18] sm:$0xff] %v1295
    // Predicated region
    $region34: #{tpu_custom_call.1} parent=1 // pred_check
      _
    $region35: #{tpu_custom_call.1} parent=1 // pred_check_branch
      %1301 = sbr.rel (0) target = $region37
    $region36: #{tpu_custom_call.1} parent=1 // pred_region
      %s1303 = ssub.s32 512, 512
      %1304 = vsyncadd [#allocation4], %s1303
      %s1305 = sshll.u32 [#allocation7], 4
      %s1306 = int_to_ptr.vmem [resolvable:$true] %s1305
      %1311 = dma.vmem_to_hbm [thread:$0]  %s1306, 512, %s6, [#allocation4], 128, 128, 8
    $region37: #{tpu_custom_call.1} parent=1 // pred_fallthru
      _
    // Predicated region
    $region38: #{tpu_custom_call.1} parent=1 // pred_check
      _
    $region39: #{tpu_custom_call.1} parent=1 // pred_check_branch
      %1313 = sbr.rel (0) target = $region41
    $region40: #{tpu_custom_call.1} parent=1 // pred_region
      %1314 = dma.done [#allocation4], 512
    $region41: #{tpu_custom_call.1} parent=1 // pred_fallthru
      _
    %1315 = vsyncpa [#allocation3], 1
    %1316 = vsyncpa [#allocation4], 1
    %1317 = vsyncpa [#allocation5], 1

</llo_original>
